<compile_context>
chip_gen: v6e
topology: v6e:2x2x1
jax: 0.10.0
libtpu: 0.0.40
codegen_flags: <defaults>
</compile_context>

<pallas_src>
import jax
import jax.numpy as jnp
from jax import lax
from jax.experimental import pallas as pl
from jax.experimental.pallas import tpu as pltpu


def _round_up(x, m):
    return (x + m - 1) // m * m


def nnlm_kernel(x_ref,      # (rows, Dp)   bf16  embedded inputs, row = t*Bp + b
                w_ih_ref,   # (Dp, 4*Hp)   bf16  input->gate weights (gate-major, lane-padded)
                w_hh_ref,   # (Hp, 4*Hp)   bf16  hidden->gate weights
                b_ref,      # (1, 4*Hp)    f32   combined bias b_ih + b_hh
                w_cls_ref,  # (Hp, Vp)     bf16  classifier weights
                b_cls_ref,  # (1, Vp)      f32   classifier bias (pad vocab cols = -1e30)
                out_ref,    # (rows, Vp)   f32   softmax probabilities for this tile
                h_ref,      # scratch (Bp, Hp) f32   hidden state (carried across grid steps)
                c_ref,      # scratch (Bp, Hp) f32   cell state   (carried across grid steps)
                gx_ref):    # scratch (rows, 4*Hp) f32  batched input projection
    Bp, Hp = h_ref.shape
    rows = x_ref.shape[0]
    Ts = rows // Bp          # static and small (tile length capped at 8)

    # Initialise the recurrent state once (first sequence tile); it is carried
    # across grid steps in scratch.  The sequence axis MUST stay "arbitrary".
    @pl.when(pl.program_id(0) == 0)
    def _():
        h_ref[...] = jnp.zeros_like(h_ref)
        c_ref[...] = jnp.zeros_like(c_ref)

    # (1) Batched input projection for the whole tile: one bf16 MXU matmul,
    #     off the serial critical path.  Bias broadcast added once.
    gx_ref[...] = (
        jnp.dot(x_ref[...], w_ih_ref[...], preferred_element_type=jnp.float32)
        + b_ref[...])

    # (2) Serial LSTM recurrence.  h/c stay in registers for the whole tile;
    #     the loop is a short static unroll (Ts <= 8) so the LLO scheduler can
    #     interleave the small matmul with the EUP transcendentals.
    w_hh = w_hh_ref[...]                     # hoisted out of the loop (bf16)
    h = h_ref[...]
    c = c_ref[...]
    hs = []
    for t in range(Ts):
        # Static, sublane-aligned (Bp, 4Hp) slab of the precomputed projection.
        gates = gx_ref[t * Bp:(t + 1) * Bp, :] + jnp.dot(
            h.astype(jnp.bfloat16), w_hh, preferred_element_type=jnp.float32)
        # Gate blocks are lane-padded to Hp (multiple of 128): aligned slices.
        i_g = jax.nn.sigmoid(gates[:, 0 * Hp:1 * Hp])
        f_g = jax.nn.sigmoid(gates[:, 1 * Hp:2 * Hp])
        g_g = jnp.tanh(gates[:, 2 * Hp:3 * Hp])
        o_g = jax.nn.sigmoid(gates[:, 3 * Hp:4 * Hp])
        c = f_g * c + i_g * g_g
        h = o_g * jnp.tanh(c)
        hs.append(h)
    h_ref[...] = h                           # single state writeback per tile
    c_ref[...] = c
    hs_tile = jnp.concatenate(hs, axis=0)    # (rows, Hp), row = t*Bp + b

    # (3) Batched classifier + softmax for the whole tile: one
    #     (rows, Hp) @ (Hp, Vp) bf16 matmul and one lane-dense (rows, Vp) store.
    #     Pad vocab columns carry a -1e30 bias -> exp underflows to exactly 0.
    logits = (jnp.dot(hs_tile.astype(jnp.bfloat16), w_cls_ref[...],
                      preferred_element_type=jnp.float32) + b_cls_ref[...])
    m = jnp.max(logits, axis=-1, keepdims=True)
    e = jnp.exp(logits - m)
    denom = jnp.sum(e, axis=-1, keepdims=True)
    # Exact normalisation: the approx reciprocal left row sums ~1e-3 off 1.0.
    out_ref[...] = e / denom


def init_params(key, vocab_size, input_dim):
    """Deterministic synthetic parameters (same shapes as the PyTorch module)."""
    H = input_dim
    ks = jax.random.split(key, 7)
    scale = 0.1
    params = {
        "embedding": jax.random.normal(ks[0], (vocab_size, input_dim), jnp.float32) * scale,
        # PyTorch LSTM param shapes: weight_ih_l0 (4H, D), weight_hh_l0 (4H, H),
        # bias_ih_l0 (4H,), bias_hh_l0 (4H,).  Gate order: i, f, g, o.
        "w_ih": jax.random.normal(ks[1], (4 * H, input_dim), jnp.float32) * scale,
        "w_hh": jax.random.normal(ks[2], (4 * H, H), jnp.float32) * scale,
        "b_ih": jax.random.normal(ks[3], (4 * H,), jnp.float32) * scale,
        "b_hh": jax.random.normal(ks[4], (4 * H,), jnp.float32) * scale,
        # nn.Linear(input_dim, vocab): weight (V, H), bias (V,)
        "w_cls": jax.random.normal(ks[5], (vocab_size, H), jnp.float32) * scale,
        "b_cls": jax.random.normal(ks[6], (vocab_size,), jnp.float32) * scale,
    }
    return params


def _pick_seq_tile(S, cap=8):
    """Largest tile length Ts <= cap dividing S (caps the in-kernel unroll)."""
    best = 1
    for ts in range(1, min(S, cap) + 1):
        if S % ts == 0:
            best = ts
    return best


def _vmem_limit_bytes():
    """Generation-aware scoped-VMEM limit (~3/4 of physical), 32 MiB fallback."""
    try:
        cap = int(pltpu.get_tpu_info().vmem_capacity_bytes)
    except Exception:            # no TPU visible / interpret mode
        return 32 * 1024 * 1024
    return max(32 * 1024 * 1024, min(cap * 3 // 4, 100 * 1024 * 1024))


def language_model_forward(params, tokens, *, seq_tile=None):
    """tokens: int32 (B, S).  Returns softmax probs (B, S, V) like the PyTorch module."""
    B, S = tokens.shape
    V, D = params["embedding"].shape
    H = D
    Hp = _round_up(H, 128)     # lane-pad hidden: gate slices & classifier K aligned
    Vp = _round_up(V, 128)     # lane-pad vocab: lane-dense output store
    Dp = _round_up(D, 128)     # lane-pad embedding dim: lane-dense x tile / MXU K

    if seq_tile is None:
        seq_tile = _pick_seq_tile(S)
    assert S % seq_tile == 0
    Ts = seq_tile              # keep small (<= 8): it is the in-kernel unroll factor

    # Sublane-pad the batch so every per-step slab is (8,128)-aligned; keep
    # rows a multiple of 16 so bf16 tiles are aligned as well.
    Bp = _round_up(B, 8)
    if (Ts * Bp) % 16 != 0:
        Bp = _round_up(B, 16)
    rows = Ts * Bp

    # ---- glue (plain JAX): embedding gather + padding + time-major rows ----
    x_emb = jnp.take(params["embedding"], tokens, axis=0)            # (B, S, D)
    x_emb = jnp.pad(x_emb, ((0, Bp - B), (0, 0), (0, Dp - D)))       # (Bp, S, Dp)
    x_rows = (jnp.transpose(x_emb, (1, 0, 2))
              .reshape(S * Bp, Dp).astype(jnp.bfloat16))             # row = t*Bp + b

    # ---- weight prep: transpose + gate-wise lane padding + bf16 MXU operands ----
    w_ih_t = params["w_ih"].T.reshape(D, 4, H)
    w_ih_t = jnp.pad(w_ih_t, ((0, Dp - D), (0, 0), (0, Hp - H)))
    w_ih_t = w_ih_t.reshape(Dp, 4 * Hp).astype(jnp.bfloat16)

    w_hh_t = params["w_hh"].T.reshape(H, 4, H)
    w_hh_t = jnp.pad(w_hh_t, ((0, Hp - H), (0, 0), (0, Hp - H)))
    w_hh_t = w_hh_t.reshape(Hp, 4 * Hp).astype(jnp.bfloat16)

    b = (params["b_ih"] + params["b_hh"]).reshape(4, H)
    b = jnp.pad(b, ((0, 0), (0, Hp - H))).reshape(1, 4 * Hp)          # f32

    w_cls_t = jnp.pad(params["w_cls"].T,
                      ((0, Hp - H), (0, Vp - V))).astype(jnp.bfloat16)   # (Hp, Vp)
    b_cls = jnp.pad(params["b_cls"], (0, Vp - V),
                    constant_values=-1e30).reshape(1, Vp)                # pad -> 0 prob

    grid = (S // Ts,)

    # TODO(synk): at realistic vocab sizes, tile the classifier over Vp (two-pass
    # / online softmax across V tiles) and mark that axis "parallel" so both v7x
    # TensorCores are used; the sequence axis must stay "arbitrary" (it carries
    # h/c in scratch).  Constant-index weight blocks could then be
    # single-buffered (pl.Buffered(1)) and the probability output emitted in
    # bf16 to halve the dominant HBM writeback on v5e.
    probs_flat = pl.pallas_call(
        nnlm_kernel,
        out_shape=jax.ShapeDtypeStruct((S * Bp, Vp), jnp.float32),
        grid=grid,
        in_specs=[
            pl.BlockSpec((rows, Dp), lambda i: (i, 0)),        # x tile (pipelined)
            pl.BlockSpec((Dp, 4 * Hp), lambda i: (0, 0)),      # weights: resident
            pl.BlockSpec((Hp, 4 * Hp), lambda i: (0, 0)),
            pl.BlockSpec((1, 4 * Hp), lambda i: (0, 0)),
            pl.BlockSpec((Hp, Vp), lambda i: (0, 0)),
            pl.BlockSpec((1, Vp), lambda i: (0, 0)),
        ],
        out_specs=pl.BlockSpec((rows, Vp), lambda i: (i, 0)),
        scratch_shapes=[
            pltpu.VMEM((Bp, Hp), jnp.float32),           # h (carried across tiles)
            pltpu.VMEM((Bp, Hp), jnp.float32),           # c (carried across tiles)
            pltpu.VMEM((rows, 4 * Hp), jnp.float32),     # batched input projection
        ],
        compiler_params=pltpu.CompilerParams(
            dimension_semantics=("arbitrary",),          # serial recurrence carry
            vmem_limit_bytes=_vmem_limit_bytes()),
    )(x_rows, w_ih_t, w_hh_t, b, w_cls_t, b_cls)

    probs = probs_flat.reshape(S, Bp, Vp)[:, :B, :V]     # drop batch/vocab padding
    return jnp.transpose(probs, (1, 0, 2))               # (B, S, V), batch-first


def language_model_reference(params, tokens):
    """Pure-JAX reference of the PyTorch forward (y=None path)."""
    B, S = tokens.shape
    V, D = params["embedding"].shape
    H = D
    x = jnp.take(params["embedding"], tokens, axis=0)        # (B, S, D)

    w_ih_t = params["w_ih"].T
    w_hh_t = params["w_hh"].T
    b = params["b_ih"] + params["b_hh"]

    def step(carry, x_t):
        h, c = carry
        gates = x_t @ w_ih_t + h @ w_hh_t + b
        i = jax.nn.sigmoid(gates[:, 0 * H:1 * H])
        f = jax.nn.sigmoid(gates[:, 1 * H:2 * H])
        g = jnp.tanh(gates[:, 2 * H:3 * H])
        o = jax.nn.sigmoid(gates[:, 3 * H:4 * H])
        c = f * c + i * g
        h = o * jnp.tanh(c)
        return (h, c), h

    h0 = jnp.zeros((B, H), jnp.float32)
    c0 = jnp.zeros((B, H), jnp.float32)
    _, hs = lax.scan(step, (h0, c0), jnp.transpose(x, (1, 0, 2)))   # (S, B, H)
    hs = jnp.transpose(hs, (1, 0, 2))                               # (B, S, H)
    logits = hs @ params["w_cls"].T + params["b_cls"]               # (B, S, V)
    return jax.nn.softmax(logits, axis=-1)


if __name__ == "__main__":
    # Small shapes consistent with the module: batch=2, seq=8, input_dim=32, vocab=64.
    B, S, D, V = 2, 8, 32, 64

    key = jax.random.PRNGKey(0)
    k_params, k_tok = jax.random.split(key)
    params = init_params(k_params, V, D)
    tokens = jax.random.randint(k_tok, (B, S), 0, V, dtype=jnp.int32)

    # seq_tile=4 -> grid of 2 sequence tiles, exercising the h/c carry across
    # grid steps and the pipelined input/output tiles.
    probs = jax.block_until_ready(language_model_forward(params, tokens, seq_tile=4))
    ref = jax.block_until_ready(language_model_reference(params, tokens))

    assert probs.shape == (B, S, V)
    assert bool(jnp.all(jnp.isfinite(probs)))
    # Exact in-kernel normalisation -> rows sum to 1 up to fp32 rounding.
    assert jnp.allclose(jnp.sum(probs, axis=-1), 1.0, atol=1e-3)
    # bf16 MXU operands (fp32 accumulation) vs. the fp32 reference.
    assert jnp.allclose(probs, ref, rtol=2e-2, atol=2e-3)

    # TODO(synk): the training branch (cross_entropy loss when y is given) and
    # dropout are not ported; only the inference/softmax forward path is in-kernel.
    print("KERNEL_OK")
</pallas_src>

<mosaic_0001>
module attributes {stable_mosaic.version = 11 : i64} {
  func.func @nnlm_kernel(%arg0: i32, %arg1: memref<32x128xbf16, #tpu.memory_space<vmem>>, %arg2: memref<128x512xbf16, #tpu.memory_space<vmem>>, %arg3: memref<128x512xbf16, #tpu.memory_space<vmem>>, %arg4: memref<1x512xf32, #tpu.memory_space<vmem>>, %arg5: memref<128x128xbf16, #tpu.memory_space<vmem>>, %arg6: memref<1x128xf32, #tpu.memory_space<vmem>>, %arg7: memref<32x128xf32, #tpu.memory_space<vmem>>, %arg8: memref<8x128xf32, #tpu.memory_space<vmem>>, %arg9: memref<8x128xf32, #tpu.memory_space<vmem>>, %arg10: memref<32x512xf32, #tpu.memory_space<vmem>>) attributes {dimension_semantics = [#tpu.dimension_semantics<arbitrary>], iteration_bounds = array<i64: 2>, scalar_prefetch = 0 : i64, scratch_operands = 3 : i64, tpu.core_type = #tpu.core_type<tc>, window_params = [{transform_indices = @transform_0, window_bounds = array<i64: 32, 128>}, {pipeline_mode = #tpu.pipeline_mode<synchronous>, transform_indices = @transform_1, window_bounds = array<i64: 128, 512>}, {pipeline_mode = #tpu.pipeline_mode<synchronous>, transform_indices = @transform_2, window_bounds = array<i64: 128, 512>}, {pipeline_mode = #tpu.pipeline_mode<synchronous>, transform_indices = @transform_3, window_bounds = array<i64: 1, 512>}, {pipeline_mode = #tpu.pipeline_mode<synchronous>, transform_indices = @transform_4, window_bounds = array<i64: 128, 128>}, {pipeline_mode = #tpu.pipeline_mode<synchronous>, transform_indices = @transform_5, window_bounds = array<i64: 1, 128>}, {transform_indices = @transform_6, window_bounds = array<i64: 32, 128>}]} {
    %c0_i32 = arith.constant 0 : i32
    %0 = arith.cmpi eq, %arg0, %c0_i32 : i32
    %1 = arith.extui %0 : i1 to i32
    %c0_i32_0 = arith.constant 0 : i32
    %2 = arith.cmpi ne, %1, %c0_i32_0 : i32
    scf.if %2 {
      %cst_48 = arith.constant 0.000000e+00 : f32
      %148 = vector.broadcast %cst_48 : f32 to vector<8x128xf32>
      %c0_49 = arith.constant 0 : index
      %c0_50 = arith.constant 0 : index
      %149 = vector.load %arg8[%c0_49, %c0_50] : memref<8x128xf32, #tpu.memory_space<vmem>>, vector<8x128xf32>
      tpu.vector_store %arg8[%c0_49, %c0_50], %148 {strides = array<i32>} : memref<8x128xf32, #tpu.memory_space<vmem>>, vector<8x128xf32>,
      %cst_51 = arith.constant 0.000000e+00 : f32
      %150 = vector.broadcast %cst_51 : f32 to vector<8x128xf32>
      %c0_52 = arith.constant 0 : index
      %c0_53 = arith.constant 0 : index
      %151 = vector.load %arg9[%c0_52, %c0_53] : memref<8x128xf32, #tpu.memory_space<vmem>>, vector<8x128xf32>
      tpu.vector_store %arg9[%c0_52, %c0_53], %150 {strides = array<i32>} : memref<8x128xf32, #tpu.memory_space<vmem>>, vector<8x128xf32>,
    } else {
    }
    %c0 = arith.constant 0 : index
    %c0_1 = arith.constant 0 : index
    %3 = vector.load %arg1[%c0, %c0_1] : memref<32x128xbf16, #tpu.memory_space<vmem>>, vector<32x128xbf16>
    %c0_2 = arith.constant 0 : index
    %c0_3 = arith.constant 0 : index
    %4 = vector.load %arg2[%c0_2, %c0_3] : memref<128x512xbf16, #tpu.memory_space<vmem>>, vector<128x512xbf16>
    %cst = arith.constant dense<0.000000e+00> : vector<32x512xf32>
    %5 = tpu.matmul %3, %4, %cst {dimension_numbers = #tpu.dot_dimension_numbers<[1], [0], [0], [1], [0, 0, 1, 1], [], []>} : vector<32x128xbf16>, vector<128x512xbf16>, vector<32x512xf32> -> vector<32x512xf32>
    %c0_4 = arith.constant 0 : index
    %c0_5 = arith.constant 0 : index
    %6 = vector.load %arg4[%c0_4, %c0_5] : memref<1x512xf32, #tpu.memory_space<vmem>>, vector<1x512xf32>
    %7 = vector.broadcast %6 : vector<1x512xf32> to vector<32x512xf32>
    %8 = arith.addf %5, %7 : vector<32x512xf32>
    %c0_6 = arith.constant 0 : index
    %c0_7 = arith.constant 0 : index
    %9 = vector.load %arg10[%c0_6, %c0_7] : memref<32x512xf32, #tpu.memory_space<vmem>>, vector<32x512xf32>
    tpu.vector_store %arg10[%c0_6, %c0_7], %8 {strides = array<i32>} : memref<32x512xf32, #tpu.memory_space<vmem>>, vector<32x512xf32>,
    %c0_8 = arith.constant 0 : index
    %c0_9 = arith.constant 0 : index
    %10 = vector.load %arg3[%c0_8, %c0_9] : memref<128x512xbf16, #tpu.memory_space<vmem>>, vector<128x512xbf16>
    %c0_10 = arith.constant 0 : index
    %c0_11 = arith.constant 0 : index
    %11 = vector.load %arg8[%c0_10, %c0_11] : memref<8x128xf32, #tpu.memory_space<vmem>>, vector<8x128xf32>
    %c0_12 = arith.constant 0 : index
    %c0_13 = arith.constant 0 : index
    %12 = vector.load %arg9[%c0_12, %c0_13] : memref<8x128xf32, #tpu.memory_space<vmem>>, vector<8x128xf32>
    %c0_14 = arith.constant 0 : index
    %c0_15 = arith.constant 0 : index
    %13 = vector.load %arg10[%c0_14, %c0_15] : memref<32x512xf32, #tpu.memory_space<vmem>>, vector<8x512xf32>
    %14 = arith.truncf %11 : vector<8x128xf32> to vector<8x128xbf16>
    %cst_16 = arith.constant dense<0.000000e+00> : vector<8x512xf32>
    %15 = tpu.matmul %14, %10, %cst_16 {dimension_numbers = #tpu.dot_dimension_numbers<[1], [0], [0], [1], [0, 0, 1, 1], [], []>} : vector<8x128xbf16>, vector<128x512xbf16>, vector<8x512xf32> -> vector<8x512xf32>
    %16 = arith.addf %13, %15 : vector<8x512xf32>
    %17 = vector.extract_strided_slice %16 {offsets = [0, 0], sizes = [8, 128], strides = [1, 1]} : vector<8x512xf32> to vector<8x128xf32>
    %18 = arith.negf %17 : vector<8x128xf32>
    %19 = math.exp %18 : vector<8x128xf32>
    %cst_17 = arith.constant 1.000000e+00 : f32
    %20 = vector.broadcast %cst_17 : f32 to vector<8x128xf32>
    %21 = arith.addf %20, %19 : vector<8x128xf32>
    %22 = arith.divf %20, %21 : vector<8x128xf32>
    %23 = vector.extract_strided_slice %16 {offsets = [0, 128], sizes = [8, 128], strides = [1, 1]} : vector<8x512xf32> to vector<8x128xf32>
    %24 = arith.negf %23 : vector<8x128xf32>
    %25 = math.exp %24 : vector<8x128xf32>
    %cst_18 = arith.constant 1.000000e+00 : f32
    %26 = vector.broadcast %cst_18 : f32 to vector<8x128xf32>
    %27 = arith.addf %26, %25 : vector<8x128xf32>
    %28 = arith.divf %26, %27 : vector<8x128xf32>
    %29 = vector.extract_strided_slice %16 {offsets = [0, 256], sizes = [8, 128], strides = [1, 1]} : vector<8x512xf32> to vector<8x128xf32>
    %30 = math.tanh %29 : vector<8x128xf32>
    %31 = vector.extract_strided_slice %16 {offsets = [0, 384], sizes = [8, 128], strides = [1, 1]} : vector<8x512xf32> to vector<8x128xf32>
    %32 = arith.negf %31 : vector<8x128xf32>
    %33 = math.exp %32 : vector<8x128xf32>
    %cst_19 = arith.constant 1.000000e+00 : f32
    %34 = vector.broadcast %cst_19 : f32 to vector<8x128xf32>
    %35 = arith.addf %34, %33 : vector<8x128xf32>
    %36 = arith.divf %34, %35 : vector<8x128xf32>
    %37 = arith.mulf %28, %12 : vector<8x128xf32>
    %38 = arith.mulf %22, %30 : vector<8x128xf32>
    %39 = arith.addf %37, %38 : vector<8x128xf32>
    %40 = math.tanh %39 : vector<8x128xf32>
    %41 = arith.mulf %36, %40 : vector<8x128xf32>
    %c8 = arith.constant 8 : index
    %c0_20 = arith.constant 0 : index
    %42 = vector.load %arg10[%c8, %c0_20] : memref<32x512xf32, #tpu.memory_space<vmem>>, vector<8x512xf32>
    %43 = arith.truncf %41 : vector<8x128xf32> to vector<8x128xbf16>
    %cst_21 = arith.constant dense<0.000000e+00> : vector<8x512xf32>
    %44 = tpu.matmul %43, %10, %cst_21 {dimension_numbers = #tpu.dot_dimension_numbers<[1], [0], [0], [1], [0, 0, 1, 1], [], []>} : vector<8x128xbf16>, vector<128x512xbf16>, vector<8x512xf32> -> vector<8x512xf32>
    %45 = arith.addf %42, %44 : vector<8x512xf32>
    %46 = vector.extract_strided_slice %45 {offsets = [0, 0], sizes = [8, 128], strides = [1, 1]} : vector<8x512xf32> to vector<8x128xf32>
    %47 = arith.negf %46 : vector<8x128xf32>
    %48 = math.exp %47 : vector<8x128xf32>
    %cst_22 = arith.constant 1.000000e+00 : f32
    %49 = vector.broadcast %cst_22 : f32 to vector<8x128xf32>
    %50 = arith.addf %49, %48 : vector<8x128xf32>
    %51 = arith.divf %49, %50 : vector<8x128xf32>
    %52 = vector.extract_strided_slice %45 {offsets = [0, 128], sizes = [8, 128], strides = [1, 1]} : vector<8x512xf32> to vector<8x128xf32>
    %53 = arith.negf %52 : vector<8x128xf32>
    %54 = math.exp %53 : vector<8x128xf32>
    %cst_23 = arith.constant 1.000000e+00 : f32
    %55 = vector.broadcast %cst_23 : f32 to vector<8x128xf32>
    %56 = arith.addf %55, %54 : vector<8x128xf32>
    %57 = arith.divf %55, %56 : vector<8x128xf32>
    %58 = vector.extract_strided_slice %45 {offsets = [0, 256], sizes = [8, 128], strides = [1, 1]} : vector<8x512xf32> to vector<8x128xf32>
    %59 = math.tanh %58 : vector<8x128xf32>
    %60 = vector.extract_strided_slice %45 {offsets = [0, 384], sizes = [8, 128], strides = [1, 1]} : vector<8x512xf32> to vector<8x128xf32>
    %61 = arith.negf %60 : vector<8x128xf32>
    %62 = math.exp %61 : vector<8x128xf32>
    %cst_24 = arith.constant 1.000000e+00 : f32
    %63 = vector.broadcast %cst_24 : f32 to vector<8x128xf32>
    %64 = arith.addf %63, %62 : vector<8x128xf32>
    %65 = arith.divf %63, %64 : vector<8x128xf32>
    %66 = arith.mulf %57, %39 : vector<8x128xf32>
    %67 = arith.mulf %51, %59 : vector<8x128xf32>
    %68 = arith.addf %66, %67 : vector<8x128xf32>
    %69 = math.tanh %68 : vector<8x128xf32>
    %70 = arith.mulf %65, %69 : vector<8x128xf32>
    %c16 = arith.constant 16 : index
    %c0_25 = arith.constant 0 : index
    %71 = vector.load %arg10[%c16, %c0_25] : memref<32x512xf32, #tpu.memory_space<vmem>>, vector<8x512xf32>
    %72 = arith.truncf %70 : vector<8x128xf32> to vector<8x128xbf16>
    %cst_26 = arith.constant dense<0.000000e+00> : vector<8x512xf32>
    %73 = tpu.matmul %72, %10, %cst_26 {dimension_numbers = #tpu.dot_dimension_numbers<[1], [0], [0], [1], [0, 0, 1, 1], [], []>} : vector<8x128xbf16>, vector<128x512xbf16>, vector<8x512xf32> -> vector<8x512xf32>
    %74 = arith.addf %71, %73 : vector<8x512xf32>
    %75 = vector.extract_strided_slice %74 {offsets = [0, 0], sizes = [8, 128], strides = [1, 1]} : vector<8x512xf32> to vector<8x128xf32>
    %76 = arith.negf %75 : vector<8x128xf32>
    %77 = math.exp %76 : vector<8x128xf32>
    %cst_27 = arith.constant 1.000000e+00 : f32
    %78 = vector.broadcast %cst_27 : f32 to vector<8x128xf32>
    %79 = arith.addf %78, %77 : vector<8x128xf32>
    %80 = arith.divf %78, %79 : vector<8x128xf32>
    %81 = vector.extract_strided_slice %74 {offsets = [0, 128], sizes = [8, 128], strides = [1, 1]} : vector<8x512xf32> to vector<8x128xf32>
    %82 = arith.negf %81 : vector<8x128xf32>
    %83 = math.exp %82 : vector<8x128xf32>
    %cst_28 = arith.constant 1.000000e+00 : f32
    %84 = vector.broadcast %cst_28 : f32 to vector<8x128xf32>
    %85 = arith.addf %84, %83 : vector<8x128xf32>
    %86 = arith.divf %84, %85 : vector<8x128xf32>
    %87 = vector.extract_strided_slice %74 {offsets = [0, 256], sizes = [8, 128], strides = [1, 1]} : vector<8x512xf32> to vector<8x128xf32>
    %88 = math.tanh %87 : vector<8x128xf32>
    %89 = vector.extract_strided_slice %74 {offsets = [0, 384], sizes = [8, 128], strides = [1, 1]} : vector<8x512xf32> to vector<8x128xf32>
    %90 = arith.negf %89 : vector<8x128xf32>
    %91 = math.exp %90 : vector<8x128xf32>
    %cst_29 = arith.constant 1.000000e+00 : f32
    %92 = vector.broadcast %cst_29 : f32 to vector<8x128xf32>
    %93 = arith.addf %92, %91 : vector<8x128xf32>
    %94 = arith.divf %92, %93 : vector<8x128xf32>
    %95 = arith.mulf %86, %68 : vector<8x128xf32>
    %96 = arith.mulf %80, %88 : vector<8x128xf32>
    %97 = arith.addf %95, %96 : vector<8x128xf32>
    %98 = math.tanh %97 : vector<8x128xf32>
    %99 = arith.mulf %94, %98 : vector<8x128xf32>
    %c24 = arith.constant 24 : index
    %c0_30 = arith.constant 0 : index
    %100 = vector.load %arg10[%c24, %c0_30] : memref<32x512xf32, #tpu.memory_space<vmem>>, vector<8x512xf32>
    %101 = arith.truncf %99 : vector<8x128xf32> to vector<8x128xbf16>
    %cst_31 = arith.constant dense<0.000000e+00> : vector<8x512xf32>
    %102 = tpu.matmul %101, %10, %cst_31 {dimension_numbers = #tpu.dot_dimension_numbers<[1], [0], [0], [1], [0, 0, 1, 1], [], []>} : vector<8x128xbf16>, vector<128x512xbf16>, vector<8x512xf32> -> vector<8x512xf32>
    %103 = arith.addf %100, %102 : vector<8x512xf32>
    %104 = vector.extract_strided_slice %103 {offsets = [0, 0], sizes = [8, 128], strides = [1, 1]} : vector<8x512xf32> to vector<8x128xf32>
    %105 = arith.negf %104 : vector<8x128xf32>
    %106 = math.exp %105 : vector<8x128xf32>
    %cst_32 = arith.constant 1.000000e+00 : f32
    %107 = vector.broadcast %cst_32 : f32 to vector<8x128xf32>
    %108 = arith.addf %107, %106 : vector<8x128xf32>
    %109 = arith.divf %107, %108 : vector<8x128xf32>
    %110 = vector.extract_strided_slice %103 {offsets = [0, 128], sizes = [8, 128], strides = [1, 1]} : vector<8x512xf32> to vector<8x128xf32>
    %111 = arith.negf %110 : vector<8x128xf32>
    %112 = math.exp %111 : vector<8x128xf32>
    %cst_33 = arith.constant 1.000000e+00 : f32
    %113 = vector.broadcast %cst_33 : f32 to vector<8x128xf32>
    %114 = arith.addf %113, %112 : vector<8x128xf32>
    %115 = arith.divf %113, %114 : vector<8x128xf32>
    %116 = vector.extract_strided_slice %103 {offsets = [0, 256], sizes = [8, 128], strides = [1, 1]} : vector<8x512xf32> to vector<8x128xf32>
    %117 = math.tanh %116 : vector<8x128xf32>
    %118 = vector.extract_strided_slice %103 {offsets = [0, 384], sizes = [8, 128], strides = [1, 1]} : vector<8x512xf32> to vector<8x128xf32>
    %119 = arith.negf %118 : vector<8x128xf32>
    %120 = math.exp %119 : vector<8x128xf32>
    %cst_34 = arith.constant 1.000000e+00 : f32
    %121 = vector.broadcast %cst_34 : f32 to vector<8x128xf32>
    %122 = arith.addf %121, %120 : vector<8x128xf32>
    %123 = arith.divf %121, %122 : vector<8x128xf32>
    %124 = arith.mulf %115, %97 : vector<8x128xf32>
    %125 = arith.mulf %109, %117 : vector<8x128xf32>
    %126 = arith.addf %124, %125 : vector<8x128xf32>
    %127 = math.tanh %126 : vector<8x128xf32>
    %128 = arith.mulf %123, %127 : vector<8x128xf32>
    %c0_35 = arith.constant 0 : index
    %c0_36 = arith.constant 0 : index
    %129 = vector.load %arg8[%c0_35, %c0_36] : memref<8x128xf32, #tpu.memory_space<vmem>>, vector<8x128xf32>
    tpu.vector_store %arg8[%c0_35, %c0_36], %128 {strides = array<i32>} : memref<8x128xf32, #tpu.memory_space<vmem>>, vector<8x128xf32>,
    %c0_37 = arith.constant 0 : index
    %c0_38 = arith.constant 0 : index
    %130 = vector.load %arg9[%c0_37, %c0_38] : memref<8x128xf32, #tpu.memory_space<vmem>>, vector<8x128xf32>
    tpu.vector_store %arg9[%c0_37, %c0_38], %126 {strides = array<i32>} : memref<8x128xf32, #tpu.memory_space<vmem>>, vector<8x128xf32>,
    %131 = tpu.concatenate %41, %70, %99, %128 in 0 : vector<8x128xf32>, vector<8x128xf32>, vector<8x128xf32>, vector<8x128xf32> -> vector<32x128xf32>
    %132 = arith.truncf %131 : vector<32x128xf32> to vector<32x128xbf16>
    %c0_39 = arith.constant 0 : index
    %c0_40 = arith.constant 0 : index
    %133 = vector.load %arg5[%c0_39, %c0_40] : memref<128x128xbf16, #tpu.memory_space<vmem>>, vector<128x128xbf16>
    %cst_41 = arith.constant dense<0.000000e+00> : vector<32x128xf32>
    %134 = tpu.matmul %132, %133, %cst_41 {dimension_numbers = #tpu.dot_dimension_numbers<[1], [0], [0], [1], [0, 0, 1, 1], [], []>} : vector<32x128xbf16>, vector<128x128xbf16>, vector<32x128xf32> -> vector<32x128xf32>
    %c0_42 = arith.constant 0 : index
    %c0_43 = arith.constant 0 : index
    %135 = vector.load %arg6[%c0_42, %c0_43] : memref<1x128xf32, #tpu.memory_space<vmem>>, vector<1x128xf32>
    %136 = vector.broadcast %135 : vector<1x128xf32> to vector<32x128xf32>
    %137 = arith.addf %134, %136 : vector<32x128xf32>
    %cst_44 = arith.constant dense<0xFF800000> : vector<32xf32>
    %138 = vector.multi_reduction <maximumf>, %137, %cst_44 [1] : vector<32x128xf32> to vector<32xf32>
    %139 = vector.shape_cast %138 : vector<32xf32> to vector<32x1xf32>
    %140 = vector.broadcast %139 : vector<32x1xf32> to vector<32x128xf32>
    %141 = arith.subf %137, %140 : vector<32x128xf32>
    %142 = math.exp %141 : vector<32x128xf32>
    %cst_45 = arith.constant dense<0.000000e+00> : vector<32xf32>
    %143 = vector.multi_reduction <add>, %142, %cst_45 [1] : vector<32x128xf32> to vector<32xf32>
    %144 = vector.shape_cast %143 : vector<32xf32> to vector<32x1xf32>
    %145 = vector.broadcast %144 : vector<32x1xf32> to vector<32x128xf32>
    %146 = arith.divf %142, %145 : vector<32x128xf32>
    %c0_46 = arith.constant 0 : index
    %c0_47 = arith.constant 0 : index
    %147 = vector.load %arg7[%c0_46, %c0_47] : memref<32x128xf32, #tpu.memory_space<vmem>>, vector<32x128xf32>
    tpu.vector_store %arg7[%c0_46, %c0_47], %146 {strides = array<i32>} : memref<32x128xf32, #tpu.memory_space<vmem>>, vector<32x128xf32>,
    return
  }
  func.func @transform_0(%arg0: i32) -> (i32, i32) {
    %c0_i32 = arith.constant 0 : i32
    %c0_i32_0 = arith.constant 0 : i32
    return %arg0, %c0_i32 : i32, i32
  }
  func.func @transform_1(%arg0: i32) -> (i32, i32) {
    %c0_i32 = arith.constant 0 : i32
    %c0_i32_0 = arith.constant 0 : i32
    %c0_i32_1 = arith.constant 0 : i32
    return %c0_i32, %c0_i32_0 : i32, i32
  }
  func.func @transform_2(%arg0: i32) -> (i32, i32) {
    %c0_i32 = arith.constant 0 : i32
    %c0_i32_0 = arith.constant 0 : i32
    %c0_i32_1 = arith.constant 0 : i32
    return %c0_i32, %c0_i32_0 : i32, i32
  }
  func.func @transform_3(%arg0: i32) -> (i32, i32) {
    %c0_i32 = arith.constant 0 : i32
    %c0_i32_0 = arith.constant 0 : i32
    %c0_i32_1 = arith.constant 0 : i32
    return %c0_i32, %c0_i32_0 : i32, i32
  }
  func.func @transform_4(%arg0: i32) -> (i32, i32) {
    %c0_i32 = arith.constant 0 : i32
    %c0_i32_0 = arith.constant 0 : i32
    %c0_i32_1 = arith.constant 0 : i32
    return %c0_i32, %c0_i32_0 : i32, i32
  }
  func.func @transform_5(%arg0: i32) -> (i32, i32) {
    %c0_i32 = arith.constant 0 : i32
    %c0_i32_0 = arith.constant 0 : i32
    %c0_i32_1 = arith.constant 0 : i32
    return %c0_i32, %c0_i32_0 : i32, i32
  }
  func.func @transform_6(%arg0: i32) -> (i32, i32) {
    %c0_i32 = arith.constant 0 : i32
    %c0_i32_0 = arith.constant 0 : i32
    return %arg0, %c0_i32 : i32, i32
  }
}

</mosaic_0001>

<llo_original>
// kernel: tpu_custom_call.1
$region0: #{tpu_custom_call.1}
  #allocation0 [shape = 'u32[]', space=smem, size = 0x4, offset = 0x4, fixed_abs, tag = 'smem constant byte address 0x4 - core index']
  #allocation1 [shape = 'u32[144,128]{1,0:T(1,128)}', space=vmem, size = 0x12000, scoped, tag = 'internal scratch']
  #allocation2 [shape = 'f32[8,128]{1,0:T(8,128)}', space=vmem, size = 0x1000, scoped, tag = 'scratch operand']
  #allocation3 [shape = 'f32[8,128]{1,0:T(8,128)}', space=vmem, size = 0x1000, scoped, tag = 'scratch operand']
  #allocation4 [shape = 'f32[32,512]{1,0:T(8,128)}', space=vmem, size = 0x10000, scoped, tag = 'scratch operand']
  %s0 = inlined_call_operand.hbm [shape: bf16[64,128], index: 0, kind: input, shape index: {}]
  %s1 = inlined_call_operand.hbm [shape: bf16[128,512], index: 1, kind: input, shape index: {}]
  %s2 = inlined_call_operand.hbm [shape: bf16[128,512], index: 2, kind: input, shape index: {}]
  %s3 = inlined_call_operand.vmem [shape: f32[1,512], index: 3, kind: input, shape index: {}]
  %s4 = inlined_call_operand.hbm [shape: bf16[128,128], index: 4, kind: input, shape index: {}]
  %s5 = inlined_call_operand.vmem [shape: f32[1,128], index: 5, kind: input, shape index: {}]
  %s6 = inlined_call_operand.hbm [shape: f32[64,128], index: 6, kind: output, shape index: {}]
  %s7 = sld [smem:[#allocation0]]
  $region77: #{tpu_custom_call.1} parent=0
    _
  %s9 = ssub.s32 1, %s7
  %s10 = scalar_select 0, %s9, %s7
  $region1: #{tpu_custom_call.1} parent=0
    #allocation5 [shape = 'u8[16384]{0}', space=vmem, size = 0x4000, scoped, tag = 'input window, operand 0']
    #allocation6 [shape = 's32[2]{0}', space=sflag, size = 0x8, scoped, tag = 'scoped memory for tpu_custom_call.1']
    #allocation7 [shape = 's32[2]{0}', space=sflag, size = 0x8, scoped, tag = 'scoped memory for tpu_custom_call.1']
    #allocation8 [shape = 'u8[131072]{0}', space=vmem, size = 0x20000, scoped, tag = 'input window, operand 1, single buffered']
    #allocation9 [shape = 's32[1]{0}', space=sflag, size = 0x4, scoped, tag = 'scoped memory for tpu_custom_call.1']
    #allocation10 [shape = 'u8[131072]{0}', space=vmem, size = 0x20000, scoped, tag = 'input window, operand 2, single buffered']
    #allocation11 [shape = 'u8[32768]{0}', space=vmem, size = 0x8000, scoped, tag = 'input window, operand 4, single buffered']
    #allocation12 [shape = 's32[1]{0}', space=sflag, size = 0x4, scoped, tag = 'scoped memory for tpu_custom_call.1']
    #allocation13 [shape = 'u8[32768]{0}', space=vmem, size = 0x8000, scoped, tag = 'output window, operand 0']
    %11 = vsyncpa [#allocation6], 0
    %s12 = scalar_lea.sflag [#allocation6], 1
    %13 = vsyncpa %s12, 0
    %14 = vsyncpa [#allocation9], 0
    %15 = vsyncpa [#allocation12], 0
    %16 = vsyncpa [#allocation7], 0
    %s17 = scalar_lea.sflag [#allocation7], 1
    %18 = vsyncpa %s17, 0
    loop: start=0, step=1, limit=4
    $region2: #{tpu_custom_call.1} parent=1 // loop_pre_header
      _
    $region3: #{tpu_custom_call.1} parent=1 // loop_header
      %s20 = sphi 0, %s24
      %p21 = scmp.ge.s32.totalorder %s20, 4
      %s30 = sphi 0, %s32
      %s33 = sphi 0, %s30
      %s34 = sphi 0, %s33
      %s50 = sphi 0, %s34
      %s54 = sphi 0, %s54
      %s56 = sphi 0, %s54
      %s57 = sphi 0, %s56
      %s71 = sphi 0, %s57
      %s75 = sphi 0, %s75
      %s77 = sphi 0, %s75
      %s78 = sphi 0, %s77
      %s92 = sphi 0, %s78
      %s96 = sphi 0, %s96
      %s98 = sphi 0, %s96
      %s99 = sphi 0, %s98
      %s113 = sphi 0, %s99
      %s117 = sphi 0, %s117
      %s119 = sphi 0, %s117
      %s120 = sphi 0, %s119
      %s134 = sphi 0, %s120
      %s138 = sphi 0, %s138
      %s140 = sphi 0, %s138
      %s141 = sphi 0, %s140
      %s155 = sphi 0, %s141
      %s161 = sphi 0, %s163
      %s164 = sphi 0, %s161
      %s165 = sphi 0, %s164
      %s181 = sphi 0, %s165
    $region4: #{tpu_custom_call.1} parent=1 // loop_header_branch
      %23 = sbr.rel (%p21) target = $region8
    $region5: #{tpu_custom_call.1} parent=1 // loop_body
      %s25 = ssub.s32 %s20, 1
      %s26 = ssub.s32 %s20, 2
      %s27 = sadd.s32 %s20, 1
      %s28 = ssub.s32 %s20, %s27
      %p29 = scmp.eq.s32.totalorder %s28, 0
      %s31 = sadd.s32 %s30, 1
      %s32 = scalar_select %p29, %s30, %s31
      %p35 = pneg %p29
      %p36 = scmp.eq.s32.totalorder %s20, 1
      %p37 = por %p35, %p36
      %p38 = scmp.ne.s32.totalorder %s30, %s33
      %p39 = scmp.eq.s32.totalorder %s20, 0
      %p40 = por %p38, %p39
      %p41 = scmp.ne.s32.totalorder %s30, %s33
      %p42 = scmp.eq.s32.totalorder %s25, 1
      %p43 = por %p41, %p42
      %p44 = scmp.ne.s32.totalorder %s33, %s34
      %p45 = scmp.eq.s32.totalorder %s25, 0
      %p46 = por %p44, %p45
      %p47 = scmp.ne.s32.totalorder %s33, %s34
      %p48 = scmp.eq.s32.totalorder %s26, 1
      %p49 = por %p47, %p48
      %p51 = scmp.ne.s32.totalorder %s34, %s50
      %p52 = scmp.eq.s32.totalorder %s26, 0
      %p53 = por %p51, %p52
      %s55 = sadd.s32 %s54, 1
      %p58 = scmp.eq.s32.totalorder %s20, 1
      %p59 = scmp.ne.s32.totalorder %s54, %s56
      %p60 = scmp.eq.s32.totalorder %s20, 0
      %p61 = por %p59, %p60
      %p62 = scmp.ne.s32.totalorder %s54, %s56
      %p63 = scmp.eq.s32.totalorder %s25, 1
      %p64 = por %p62, %p63
      %p65 = scmp.ne.s32.totalorder %s56, %s57
      %p66 = scmp.eq.s32.totalorder %s25, 0
      %p67 = por %p65, %p66
      %p68 = scmp.ne.s32.totalorder %s56, %s57
      %p69 = scmp.eq.s32.totalorder %s26, 1
      %p70 = por %p68, %p69
      %p72 = scmp.ne.s32.totalorder %s57, %s71
      %p73 = scmp.eq.s32.totalorder %s26, 0
      %p74 = por %p72, %p73
      %s76 = sadd.s32 %s75, 1
      %p79 = scmp.eq.s32.totalorder %s20, 1
      %p80 = scmp.ne.s32.totalorder %s75, %s77
      %p81 = scmp.eq.s32.totalorder %s20, 0
      %p82 = por %p80, %p81
      %p83 = scmp.ne.s32.totalorder %s75, %s77
      %p84 = scmp.eq.s32.totalorder %s25, 1
      %p85 = por %p83, %p84
      %p86 = scmp.ne.s32.totalorder %s77, %s78
      %p87 = scmp.eq.s32.totalorder %s25, 0
      %p88 = por %p86, %p87
      %p89 = scmp.ne.s32.totalorder %s77, %s78
      %p90 = scmp.eq.s32.totalorder %s26, 1
      %p91 = por %p89, %p90
      %p93 = scmp.ne.s32.totalorder %s78, %s92
      %p94 = scmp.eq.s32.totalorder %s26, 0
      %p95 = por %p93, %p94
      %s97 = sadd.s32 %s96, 1
      %p100 = scmp.eq.s32.totalorder %s20, 1
      %p101 = scmp.ne.s32.totalorder %s96, %s98
      %p102 = scmp.eq.s32.totalorder %s20, 0
      %p103 = por %p101, %p102
      %p104 = scmp.ne.s32.totalorder %s96, %s98
      %p105 = scmp.eq.s32.totalorder %s25, 1
      %p106 = por %p104, %p105
      %p107 = scmp.ne.s32.totalorder %s98, %s99
      %p108 = scmp.eq.s32.totalorder %s25, 0
      %p109 = por %p107, %p108
      %p110 = scmp.ne.s32.totalorder %s98, %s99
      %p111 = scmp.eq.s32.totalorder %s26, 1
      %p112 = por %p110, %p111
      %p114 = scmp.ne.s32.totalorder %s99, %s113
      %p115 = scmp.eq.s32.totalorder %s26, 0
      %p116 = por %p114, %p115
      %s118 = sadd.s32 %s117, 1
      %p121 = scmp.eq.s32.totalorder %s20, 1
      %p122 = scmp.ne.s32.totalorder %s117, %s119
      %p123 = scmp.eq.s32.totalorder %s20, 0
      %p124 = por %p122, %p123
      %p125 = scmp.ne.s32.totalorder %s117, %s119
      %p126 = scmp.eq.s32.totalorder %s25, 1
      %p127 = por %p125, %p126
      %p128 = scmp.ne.s32.totalorder %s119, %s120
      %p129 = scmp.eq.s32.totalorder %s25, 0
      %p130 = por %p128, %p129
      %p131 = scmp.ne.s32.totalorder %s119, %s120
      %p132 = scmp.eq.s32.totalorder %s26, 1
      %p133 = por %p131, %p132
      %p135 = scmp.ne.s32.totalorder %s120, %s134
      %p136 = scmp.eq.s32.totalorder %s26, 0
      %p137 = por %p135, %p136
      %s139 = sadd.s32 %s138, 1
      %p142 = scmp.eq.s32.totalorder %s20, 1
      %p143 = scmp.ne.s32.totalorder %s138, %s140
      %p144 = scmp.eq.s32.totalorder %s20, 0
      %p145 = por %p143, %p144
      %p146 = scmp.ne.s32.totalorder %s138, %s140
      %p147 = scmp.eq.s32.totalorder %s25, 1
      %p148 = por %p146, %p147
      %p149 = scmp.ne.s32.totalorder %s140, %s141
      %p150 = scmp.eq.s32.totalorder %s25, 0
      %p151 = por %p149, %p150
      %p152 = scmp.ne.s32.totalorder %s140, %s141
      %p153 = scmp.eq.s32.totalorder %s26, 1
      %p154 = por %p152, %p153
      %p156 = scmp.ne.s32.totalorder %s141, %s155
      %p157 = scmp.eq.s32.totalorder %s26, 0
      %p158 = por %p156, %p157
      %s159 = ssub.s32 %s20, %s27
      %p160 = scmp.eq.s32.totalorder %s159, 0
      %s162 = sadd.s32 %s161, 1
      %s163 = scalar_select %p160, %s161, %s162
      %p166 = pneg %p160
      %p167 = scmp.eq.s32.totalorder %s20, 1
      %p168 = por %p166, %p167
      %p169 = scmp.ne.s32.totalorder %s161, %s164
      %p170 = scmp.eq.s32.totalorder %s20, 0
      %p171 = por %p169, %p170
      %p172 = scmp.ne.s32.totalorder %s161, %s164
      %p173 = scmp.eq.s32.totalorder %s25, 1
      %p174 = por %p172, %p173
      %p175 = scmp.ne.s32.totalorder %s164, %s165
      %p176 = scmp.eq.s32.totalorder %s25, 0
      %p177 = por %p175, %p176
      %p178 = scmp.ne.s32.totalorder %s164, %s165
      %p179 = scmp.eq.s32.totalorder %s26, 1
      %p180 = por %p178, %p179
      %p182 = scmp.ne.s32.totalorder %s165, %s181
      %p183 = scmp.eq.s32.totalorder %s26, 0
      %p184 = por %p182, %p183
      %p185 = scmp.le.s32.totalorder 1, %s20
      %p186 = scmp.lt.s32.totalorder %s20, 3
      %p187 = pnand %p185, %p186
      %p188 = pneg %p187
      // Predicated region
      $region9: #{tpu_custom_call.1} parent=5 // pred_check
        _
      $region10: #{tpu_custom_call.1} parent=5 // pred_check_branch
        %190 = sbr.rel (%p187) target = $region12
      $region11: #{tpu_custom_call.1} parent=5 // pred_region
        %s191 = ssub.s32 %s20, 1
        // Predicated region
        $region13: #{tpu_custom_call.1} parent=11 // pred_check
          %p192 = pneg %p67
        $region14: #{tpu_custom_call.1} parent=11 // pred_check_branch
          %194 = sbr.rel (%p192) target = $region16
        $region15: #{tpu_custom_call.1} parent=11 // pred_region
          %s196 = ssub.s32 4096, 4096
          %197 = vsyncadd [#allocation9], %s196
          %s198 = sshll.u32 [#allocation8], 4
          %s199 = int_to_ptr.vmem [resolvable:$true] %s198
          %204 = dma.hbm_to_vmem [thread:$0]  %s1, 4096, %s199, [#allocation9], 256, 256, 16
        $region16: #{tpu_custom_call.1} parent=11 // pred_fallthru
          _
        // Predicated region
        $region17: #{tpu_custom_call.1} parent=11 // pred_check
          %p205 = pneg %p88
        $region18: #{tpu_custom_call.1} parent=11 // pred_check_branch
          %207 = sbr.rel (%p205) target = $region20
        $region19: #{tpu_custom_call.1} parent=11 // pred_region
          %s209 = ssub.s32 4096, 4096
          %210 = vsyncadd [#allocation9], %s209
          %s211 = sshll.u32 [#allocation10], 4
          %s212 = int_to_ptr.vmem [resolvable:$true] %s211
          %217 = dma.hbm_to_vmem [thread:$0]  %s2, 4096, %s212, [#allocation9], 256, 256, 16
        $region20: #{tpu_custom_call.1} parent=11 // pred_fallthru
          _
        // Predicated region
        $region21: #{tpu_custom_call.1} parent=11 // pred_check
          %p218 = pneg %p109
        $region22: #{tpu_custom_call.1} parent=11 // pred_check_branch
          %220 = sbr.rel (%p218) target = $region24
        $region23: #{tpu_custom_call.1} parent=11 // pred_region
          _
        $region24: #{tpu_custom_call.1} parent=11 // pred_fallthru
          _
        // Predicated region
        $region25: #{tpu_custom_call.1} parent=11 // pred_check
          %p221 = pneg %p130
        $region26: #{tpu_custom_call.1} parent=11 // pred_check_branch
          %223 = sbr.rel (%p221) target = $region28
        $region27: #{tpu_custom_call.1} parent=11 // pred_region
          %s225 = ssub.s32 1024, 1024
          %226 = vsyncadd [#allocation12], %s225
          %s227 = sshll.u32 [#allocation11], 4
          %s228 = int_to_ptr.vmem [resolvable:$true] %s227
          %233 = dma.hbm_to_vmem [thread:$0]  %s4, 1024, %s228, [#allocation12], 64, 64, 4
        $region28: #{tpu_custom_call.1} parent=11 // pred_fallthru
          _
        // Predicated region
        $region29: #{tpu_custom_call.1} parent=11 // pred_check
          %p234 = pneg %p151
        $region30: #{tpu_custom_call.1} parent=11 // pred_check_branch
          %236 = sbr.rel (%p234) target = $region32
        $region31: #{tpu_custom_call.1} parent=11 // pred_region
          _
        $region32: #{tpu_custom_call.1} parent=11 // pred_fallthru
          _
      $region12: #{tpu_custom_call.1} parent=5 // pred_fallthru
        _
      %p237 = scmp.lt.s32.totalorder %s20, 2
      // Predicated region
      $region33: #{tpu_custom_call.1} parent=5 // pred_check
        %p238 = pneg %p237
      $region34: #{tpu_custom_call.1} parent=5 // pred_check_branch
        %240 = sbr.rel (%p238) target = $region36
      $region35: #{tpu_custom_call.1} parent=5 // pred_region
        // Predicated region
        $region37: #{tpu_custom_call.1} parent=35 // pred_check
          %p241 = pneg %p40
        $region38: #{tpu_custom_call.1} parent=35 // pred_check_branch
          %243 = sbr.rel (%p241) target = $region40
        $region39: #{tpu_custom_call.1} parent=35 // pred_region
          %s244 = sand.u32 %s30, 1
          %s245 = scalar_lea.sflag [#allocation6], %s244
          %s246 = sand.u32 %s30, 1
          %s247 = smul.addr %s246, 16
          %s248 = scalar_lea.vmem [#allocation5], %s247
          %s249 = smul.u32 4, %s20
          %s251 = ssub.s32 256, 256
          %252 = vsyncadd %s245, %s251
          %s253 = smul.addr %s249, 64
          %s254 = scalar_lea.hbm %s0, %s253
          %s255 = sshll.u32 %s248, 4
          %s256 = int_to_ptr.vmem [resolvable:$true] %s255
          %261 = dma.hbm_to_vmem [thread:$0]  %s254, 256, %s256, %s245, 64, 64, 4
        $region40: #{tpu_custom_call.1} parent=35 // pred_fallthru
          _
      $region36: #{tpu_custom_call.1} parent=5 // pred_fallthru
        _
      %p262 = scmp.le.s32.totalorder 1, %s20
      %p263 = scmp.lt.s32.totalorder %s20, 3
      %p264 = pnand %p262, %p263
      %p265 = pneg %p264
      // Predicated region
      $region41: #{tpu_custom_call.1} parent=5 // pred_check
        _
      $region42: #{tpu_custom_call.1} parent=5 // pred_check_branch
        %267 = sbr.rel (%p264) target = $region44
      $region43: #{tpu_custom_call.1} parent=5 // pred_region
        %s268 = ssub.s32 %s20, 1
        %s269 = sand.u32 %s33, 1
        %s270 = scalar_lea.sflag [#allocation6], %s269
        %s271 = sand.u32 %s33, 1
        %s272 = smul.addr %s271, 16
        %s273 = scalar_lea.vmem [#allocation5], %s272
        // Predicated region
        $region45: #{tpu_custom_call.1} parent=43 // pred_check
          %p274 = pneg %p46
        $region46: #{tpu_custom_call.1} parent=43 // pred_check_branch
          %276 = sbr.rel (%p274) target = $region48
        $region47: #{tpu_custom_call.1} parent=43 // pred_region
          %277 = dma.done %s270, 256
        $region48: #{tpu_custom_call.1} parent=43 // pred_fallthru
          _
        // Predicated region
        $region49: #{tpu_custom_call.1} parent=43 // pred_check
          %p278 = pneg %p67
        $region50: #{tpu_custom_call.1} parent=43 // pred_check_branch
          %280 = sbr.rel (%p278) target = $region52
        $region51: #{tpu_custom_call.1} parent=43 // pred_region
          %281 = dma.done [#allocation9], 4096
        $region52: #{tpu_custom_call.1} parent=43 // pred_fallthru
          _
        // Predicated region
        $region53: #{tpu_custom_call.1} parent=43 // pred_check
          %p282 = pneg %p88
        $region54: #{tpu_custom_call.1} parent=43 // pred_check_branch
          %284 = sbr.rel (%p282) target = $region56
        $region55: #{tpu_custom_call.1} parent=43 // pred_region
          %285 = dma.done [#allocation9], 4096
        $region56: #{tpu_custom_call.1} parent=43 // pred_fallthru
          _
        // Predicated region
        $region57: #{tpu_custom_call.1} parent=43 // pred_check
          %p286 = pneg %p130
        $region58: #{tpu_custom_call.1} parent=43 // pred_check_branch
          %288 = sbr.rel (%p286) target = $region60
        $region59: #{tpu_custom_call.1} parent=43 // pred_region
          %289 = dma.done [#allocation12], 1024
        $region60: #{tpu_custom_call.1} parent=43 // pred_fallthru
          _
        %s290 = sand.u32 %s33, 1
        %s291 = scalar_lea.sflag [#allocation6], %s290
        %s292 = sand.u32 %s33, 1
        %s293 = smul.addr %s292, 16
        %s294 = scalar_lea.vmem [#allocation5], %s293
        %p295 = pneg %p46
        %p296 = pneg %p43
        %p297 = pneg %p67
        %p298 = pneg %p64
        %p299 = pneg %p88
        %p300 = pneg %p85
        %p301 = pneg %p109
        %p302 = pneg %p106
        %p303 = pneg %p130
        %p304 = pneg %p127
        %p305 = pneg %p151
        %p306 = pneg %p148
        %p307 = pneg %p177
        %p308 = pneg %p174
        %s309 = sand.u32 %s164, 1
        %s310 = scalar_lea.sflag [#allocation7], %s309
        %s311 = sand.u32 %s164, 1
        %s312 = smul.addr %s311, 32
        %s313 = scalar_lea.vmem [#allocation13], %s312
        %s314 = smul.u32 4, %s25
        %s315 = smul.u32 4, %s25
        %p317 = scmp.eq.s32.totalorder %s25, 0
        // Predicated region
        $region61: #{tpu_custom_call.1} parent=43 // pred_check
          %p318 = pneg %p317
        $region62: #{tpu_custom_call.1} parent=43 // pred_check_branch
          %320 = sbr.rel (%p318) target = $region64
        $region63: #{tpu_custom_call.1} parent=43 // pred_region
          %321 = vst [vmem:[#allocation2] sm:$0xff] 0.0
          %322 = vst [vmem:[#allocation3] sm:$0xff] 0.0
        $region64: #{tpu_custom_call.1} parent=43 // pred_fallthru
          _
        %v323 = vld [vmem:[%s273] sm:$0xf]
        %v324 = vld [vmem:[%s273 + $0x4] sm:$0xf]
        %v325 = vld [vmem:[%s273 + $0x8] sm:$0xf]
        %v326 = vld [vmem:[%s273 + $0xc] sm:$0xf]
        %v327 = vld [vmem:[#allocation8] sm:$0xff]
        %v328 = vld [vmem:[#allocation8 + $0x8] sm:$0xff]
        %v329 = vld [vmem:[#allocation8 + $0x10] sm:$0xff]
        %v330 = vld [vmem:[#allocation8 + $0x18] sm:$0xff]
        %v331 = vld [vmem:[#allocation8 + $0x20] sm:$0xff]
        %v332 = vld [vmem:[#allocation8 + $0x28] sm:$0xff]
        %v333 = vld [vmem:[#allocation8 + $0x30] sm:$0xff]
        %v334 = vld [vmem:[#allocation8 + $0x38] sm:$0xff]
        %v335 = vld [vmem:[#allocation8 + $0x40] sm:$0xff]
        %v336 = vld [vmem:[#allocation8 + $0x48] sm:$0xff]
        %v337 = vld [vmem:[#allocation8 + $0x50] sm:$0xff]
        %v338 = vld [vmem:[#allocation8 + $0x58] sm:$0xff]
        %v339 = vld [vmem:[#allocation8 + $0x60] sm:$0xff]
        %v340 = vld [vmem:[#allocation8 + $0x68] sm:$0xff]
        %v341 = vld [vmem:[#allocation8 + $0x70] sm:$0xff]
        %v342 = vld [vmem:[#allocation8 + $0x78] sm:$0xff]
        %v343 = vld [vmem:[#allocation8 + $0x80] sm:$0xff]
        %v344 = vld [vmem:[#allocation8 + $0x88] sm:$0xff]
        %v345 = vld [vmem:[#allocation8 + $0x90] sm:$0xff]
        %v346 = vld [vmem:[#allocation8 + $0x98] sm:$0xff]
        %v347 = vld [vmem:[#allocation8 + $0xa0] sm:$0xff]
        %v348 = vld [vmem:[#allocation8 + $0xa8] sm:$0xff]
        %v349 = vld [vmem:[#allocation8 + $0xb0] sm:$0xff]
        %v350 = vld [vmem:[#allocation8 + $0xb8] sm:$0xff]
        %v351 = vld [vmem:[#allocation8 + $0xc0] sm:$0xff]
        %v352 = vld [vmem:[#allocation8 + $0xc8] sm:$0xff]
        %v353 = vld [vmem:[#allocation8 + $0xd0] sm:$0xff]
        %v354 = vld [vmem:[#allocation8 + $0xd8] sm:$0xff]
        %v355 = vld [vmem:[#allocation8 + $0xe0] sm:$0xff]
        %v356 = vld [vmem:[#allocation8 + $0xe8] sm:$0xff]
        %v357 = vld [vmem:[#allocation8 + $0xf0] sm:$0xff]
        %v358 = vld [vmem:[#allocation8 + $0xf8] sm:$0xff]
        %v359 = vld [vmem:[%s3] sm:$0xf]
        %v361 = vlaneseq
        %v362 = vshrl.u32 %v361, 7
        %v363 = vsub.s32 0, %v362
        %v364 = vrot.slane %v359, %v363
        %v365 = vlaneseq
        %v366 = vshrl.u32 %v365, 7
        %v367 = vsub.s32 1, %v366
        %v368 = vrot.slane %v359, %v367
        %v369 = vlaneseq
        %v370 = vshrl.u32 %v369, 7
        %v371 = vsub.s32 2, %v370
        %v372 = vrot.slane %v359, %v371
        %v373 = vlaneseq
        %v374 = vshrl.u32 %v373, 7
        %v375 = vsub.s32 3, %v374
        %v376 = vrot.slane %v359, %v375
        %v385 = vunpack.c.l.b16 %v323
        %v386 = vunpack.c.l.b16 %v324
        %v387 = vunpack.c.l.b16 %v325
        %v388 = vunpack.c.l.b16 %v326
        %v389 = vpack.c.b16 %v386, %v385
        %v390 = vpack.c.b16 %v388, %v387
        %v425 = vunpack.c.l.b16 %v327
        %v426 = vunpack.c.h.b16 %v327
        %v427 = vunpack.c.l.b16 %v328
        %v428 = vunpack.c.h.b16 %v328
        %v429 = vunpack.c.l.b16 %v329
        %v430 = vunpack.c.h.b16 %v329
        %v431 = vunpack.c.l.b16 %v330
        %v432 = vunpack.c.h.b16 %v330
        %v433 = vunpack.c.l.b16 %v331
        %v434 = vunpack.c.h.b16 %v331
        %v435 = vunpack.c.l.b16 %v332
        %v436 = vunpack.c.h.b16 %v332
        %v437 = vunpack.c.l.b16 %v333
        %v438 = vunpack.c.h.b16 %v333
        %v439 = vunpack.c.l.b16 %v334
        %v440 = vunpack.c.h.b16 %v334
        %v441 = vunpack.c.l.b16 %v335
        %v442 = vunpack.c.h.b16 %v335
        %v443 = vunpack.c.l.b16 %v336
        %v444 = vunpack.c.h.b16 %v336
        %v445 = vunpack.c.l.b16 %v337
        %v446 = vunpack.c.h.b16 %v337
        %v447 = vunpack.c.l.b16 %v338
        %v448 = vunpack.c.h.b16 %v338
        %v449 = vunpack.c.l.b16 %v339
        %v450 = vunpack.c.h.b16 %v339
        %v451 = vunpack.c.l.b16 %v340
        %v452 = vunpack.c.h.b16 %v340
        %v453 = vunpack.c.l.b16 %v341
        %v454 = vunpack.c.h.b16 %v341
        %v455 = vunpack.c.l.b16 %v342
        %v456 = vunpack.c.h.b16 %v342
        %v457 = vunpack.c.l.b16 %v343
        %v458 = vunpack.c.h.b16 %v343
        %v459 = vunpack.c.l.b16 %v344
        %v460 = vunpack.c.h.b16 %v344
        %v461 = vunpack.c.l.b16 %v345
        %v462 = vunpack.c.h.b16 %v345
        %v463 = vunpack.c.l.b16 %v346
        %v464 = vunpack.c.h.b16 %v346
        %v465 = vunpack.c.l.b16 %v347
        %v466 = vunpack.c.h.b16 %v347
        %v467 = vunpack.c.l.b16 %v348
        %v468 = vunpack.c.h.b16 %v348
        %v469 = vunpack.c.l.b16 %v349
        %v470 = vunpack.c.h.b16 %v349
        %v471 = vunpack.c.l.b16 %v350
        %v472 = vunpack.c.h.b16 %v350
        %v473 = vunpack.c.l.b16 %v351
        %v474 = vunpack.c.h.b16 %v351
        %v475 = vunpack.c.l.b16 %v352
        %v476 = vunpack.c.h.b16 %v352
        %v477 = vunpack.c.l.b16 %v353
        %v478 = vunpack.c.h.b16 %v353
        %v479 = vunpack.c.l.b16 %v354
        %v480 = vunpack.c.h.b16 %v354
        %v481 = vunpack.c.l.b16 %v355
        %v482 = vunpack.c.h.b16 %v355
        %v483 = vunpack.c.l.b16 %v356
        %v484 = vunpack.c.h.b16 %v356
        %v485 = vunpack.c.l.b16 %v357
        %v486 = vunpack.c.h.b16 %v357
        %v487 = vunpack.c.l.b16 %v358
        %v488 = vunpack.c.h.b16 %v358
        %v489 = vpack.c.b16 %v429, %v425
        %v490 = vpack.c.b16 %v430, %v426
        %v491 = vpack.c.b16 %v431, %v427
        %v492 = vpack.c.b16 %v432, %v428
        %v493 = vpack.c.b16 %v437, %v433
        %v494 = vpack.c.b16 %v438, %v434
        %v495 = vpack.c.b16 %v439, %v435
        %v496 = vpack.c.b16 %v440, %v436
        %v497 = vpack.c.b16 %v445, %v441
        %v498 = vpack.c.b16 %v446, %v442
        %v499 = vpack.c.b16 %v447, %v443
        %v500 = vpack.c.b16 %v448, %v444
        %v501 = vpack.c.b16 %v453, %v449
        %v502 = vpack.c.b16 %v454, %v450
        %v503 = vpack.c.b16 %v455, %v451
        %v504 = vpack.c.b16 %v456, %v452
        %v505 = vpack.c.b16 %v461, %v457
        %v506 = vpack.c.b16 %v462, %v458
        %v507 = vpack.c.b16 %v463, %v459
        %v508 = vpack.c.b16 %v464, %v460
        %v509 = vpack.c.b16 %v469, %v465
        %v510 = vpack.c.b16 %v470, %v466
        %v511 = vpack.c.b16 %v471, %v467
        %v512 = vpack.c.b16 %v472, %v468
        %v513 = vpack.c.b16 %v477, %v473
        %v514 = vpack.c.b16 %v478, %v474
        %v515 = vpack.c.b16 %v479, %v475
        %v516 = vpack.c.b16 %v480, %v476
        %v517 = vpack.c.b16 %v485, %v481
        %v518 = vpack.c.b16 %v486, %v482
        %v519 = vpack.c.b16 %v487, %v483
        %v520 = vpack.c.b16 %v488, %v484
        %553 = vmatprep.subr.bf16.mxu0 %v518
        %554 = vmatpush1.bf16.msra.mxu0 %v517
        %555 = vmatprep.subr.bf16.mxu0 %v514
        %556 = vmatpush1.bf16.msra.mxu0 %v513
        %557 = vmatprep.subr.bf16.mxu0 %v510
        %558 = vmatpush1.bf16.msra.mxu0 %v509
        %559 = vmatprep.subr.bf16.mxu0 %v506
        %560 = vmatpush1.bf16.msra.mxu0 %v505
        %561 = vmatprep.subr.bf16.mxu0 %v502
        %562 = vmatpush1.bf16.msra.mxu0 %v501
        %563 = vmatprep.subr.bf16.mxu0 %v498
        %564 = vmatpush1.bf16.msra.mxu0 %v497
        %565 = vmatprep.subr.bf16.mxu0 %v494
        %566 = vmatpush1.bf16.msra.mxu0 %v493
        %567 = vmatprep.subr.bf16.mxu0 %v490
        %568 = vmatpush1.bf16.msra.mxu0 %v489
        %569 = vmatprep.subr.bf16.mxu0 0
        %570 = vmatpush2.bf16.msra.mxu0 0
        %571 = vmatprep.subr.bf16.mxu0 0
        %572 = vmatpush2.bf16.msra.mxu0 0
        %573 = vmatprep.subr.bf16.mxu0 0
        %574 = vmatpush2.bf16.msra.mxu0 0
        %575 = vmatprep.subr.bf16.mxu0 0
        %576 = vmatpush2.bf16.msra.mxu0 0
        %577 = vmatprep.subr.bf16.mxu0 0
        %578 = vmatpush2.bf16.msra.mxu0 0
        %579 = vmatprep.subr.bf16.mxu0 0
        %580 = vmatpush2.bf16.msra.mxu0 0
        %581 = vmatprep.subr.bf16.mxu0 0
        %582 = vmatpush2.bf16.msra.mxu0 0
        %583 = vmatprep.subr.bf16.mxu0 0
        %584 = vmatpush2.bf16.msra.mxu0 0
        %585 = vmatprep.mubr.bf16.mxu0 0
        %586 = vmatmul.mubr.bf16.gmra.mxu0 %v389
        %v587 = vpop.f32.mrf.mxu0
        %v588 = vadd.f32 %v364, %v587
        %v589 = vpop.f32.mrf.mxu0
        %v590 = vadd.f32 %v368, %v589
        %v591 = vpop.f32.mrf.mxu0
        %v592 = vadd.f32 %v364, %v591
        %v593 = vpop.f32.mrf.mxu0
        %v594 = vadd.f32 %v368, %v593
        %595 = vmatprep.mubr.bf16.mxu0 0
        %596 = vmatmul.mubr.bf16.gmra.mxu0 %v390
        %v597 = vpop.f32.mrf.mxu0
        %v598 = vadd.f32 %v364, %v597
        %v599 = vpop.f32.mrf.mxu0
        %v600 = vadd.f32 %v368, %v599
        %v601 = vpop.f32.mrf.mxu0
        %v602 = vadd.f32 %v364, %v601
        %v603 = vpop.f32.mrf.mxu0
        %v604 = vadd.f32 %v368, %v603
        %605 = vdwg.mxu0
        %606 = vmatprep.subr.bf16.mxu0 %v520
        %607 = vmatpush1.bf16.msra.mxu0 %v519
        %608 = vmatprep.subr.bf16.mxu0 %v516
        %609 = vmatpush1.bf16.msra.mxu0 %v515
        %610 = vmatprep.subr.bf16.mxu0 %v512
        %611 = vmatpush1.bf16.msra.mxu0 %v511
        %612 = vmatprep.subr.bf16.mxu0 %v508
        %613 = vmatpush1.bf16.msra.mxu0 %v507
        %614 = vmatprep.subr.bf16.mxu0 %v504
        %615 = vmatpush1.bf16.msra.mxu0 %v503
        %616 = vmatprep.subr.bf16.mxu0 %v500
        %617 = vmatpush1.bf16.msra.mxu0 %v499
        %618 = vmatprep.subr.bf16.mxu0 %v496
        %619 = vmatpush1.bf16.msra.mxu0 %v495
        %620 = vmatprep.subr.bf16.mxu0 %v492
        %621 = vmatpush1.bf16.msra.mxu0 %v491
        %622 = vmatprep.subr.bf16.mxu0 0
        %623 = vmatpush2.bf16.msra.mxu0 0
        %624 = vmatprep.subr.bf16.mxu0 0
        %625 = vmatpush2.bf16.msra.mxu0 0
        %626 = vmatprep.subr.bf16.mxu0 0
        %627 = vmatpush2.bf16.msra.mxu0 0
        %628 = vmatprep.subr.bf16.mxu0 0
        %629 = vmatpush2.bf16.msra.mxu0 0
        %630 = vmatprep.subr.bf16.mxu0 0
        %631 = vmatpush2.bf16.msra.mxu0 0
        %632 = vmatprep.subr.bf16.mxu0 0
        %633 = vmatpush2.bf16.msra.mxu0 0
        %634 = vmatprep.subr.bf16.mxu0 0
        %635 = vmatpush2.bf16.msra.mxu0 0
        %636 = vmatprep.subr.bf16.mxu0 0
        %637 = vmatpush2.bf16.msra.mxu0 0
        %638 = vmatprep.mubr.bf16.mxu0 0
        %639 = vmatmul.mubr.bf16.gmra.mxu0 %v389
        %v640 = vpop.f32.mrf.mxu0
        %v641 = vadd.f32 %v372, %v640
        %v642 = vpop.f32.mrf.mxu0
        %v643 = vadd.f32 %v376, %v642
        %v644 = vpop.f32.mrf.mxu0
        %v645 = vadd.f32 %v372, %v644
        %v646 = vpop.f32.mrf.mxu0
        %v647 = vadd.f32 %v376, %v646
        %648 = vmatprep.mubr.bf16.mxu0 0
        %649 = vmatmul.mubr.bf16.gmra.mxu0 %v390
        %v650 = vpop.f32.mrf.mxu0
        %v651 = vadd.f32 %v372, %v650
        %v652 = vpop.f32.mrf.mxu0
        %v653 = vadd.f32 %v376, %v652
        %v654 = vpop.f32.mrf.mxu0
        %v655 = vadd.f32 %v372, %v654
        %v656 = vpop.f32.mrf.mxu0
        %v657 = vadd.f32 %v376, %v656
        %658 = vdwg.mxu0
        %659 = vst [vmem:[#allocation4] sm:$0xff] %v588
        %660 = vst [vmem:[#allocation4 + $0x8] sm:$0xff] %v590
        %661 = vst [vmem:[#allocation4 + $0x10] sm:$0xff] %v641
        %662 = vst [vmem:[#allocation4 + $0x18] sm:$0xff] %v643
        %663 = vst [vmem:[#allocation4 + $0x20] sm:$0xff] %v592
        %664 = vst [vmem:[#allocation4 + $0x28] sm:$0xff] %v594
        %665 = vst [vmem:[#allocation4 + $0x30] sm:$0xff] %v645
        %666 = vst [vmem:[#allocation4 + $0x38] sm:$0xff] %v647
        %667 = vst [vmem:[#allocation4 + $0x40] sm:$0xff] %v598
        %668 = vst [vmem:[#allocation4 + $0x48] sm:$0xff] %v600
        %669 = vst [vmem:[#allocation4 + $0x50] sm:$0xff] %v651
        %670 = vst [vmem:[#allocation4 + $0x58] sm:$0xff] %v653
        %671 = vst [vmem:[#allocation4 + $0x60] sm:$0xff] %v602
        %672 = vst [vmem:[#allocation4 + $0x68] sm:$0xff] %v604
        %673 = vst [vmem:[#allocation4 + $0x70] sm:$0xff] %v655
        %674 = vst [vmem:[#allocation4 + $0x78] sm:$0xff] %v657
        %v675 = vld [vmem:[#allocation10] sm:$0xff]
        %v676 = vld [vmem:[#allocation10 + $0x8] sm:$0xff]
        %v677 = vld [vmem:[#allocation10 + $0x10] sm:$0xff]
        %v678 = vld [vmem:[#allocation10 + $0x18] sm:$0xff]
        %v679 = vld [vmem:[#allocation10 + $0x20] sm:$0xff]
        %v680 = vld [vmem:[#allocation10 + $0x28] sm:$0xff]
        %v681 = vld [vmem:[#allocation10 + $0x30] sm:$0xff]
        %v682 = vld [vmem:[#allocation10 + $0x38] sm:$0xff]
        %v683 = vld [vmem:[#allocation10 + $0x40] sm:$0xff]
        %v684 = vld [vmem:[#allocation10 + $0x48] sm:$0xff]
        %v685 = vld [vmem:[#allocation10 + $0x50] sm:$0xff]
        %v686 = vld [vmem:[#allocation10 + $0x58] sm:$0xff]
        %v687 = vld [vmem:[#allocation10 + $0x60] sm:$0xff]
        %v688 = vld [vmem:[#allocation10 + $0x68] sm:$0xff]
        %v689 = vld [vmem:[#allocation10 + $0x70] sm:$0xff]
        %v690 = vld [vmem:[#allocation10 + $0x78] sm:$0xff]
        %v691 = vld [vmem:[#allocation10 + $0x80] sm:$0xff]
        %v692 = vld [vmem:[#allocation10 + $0x88] sm:$0xff]
        %v693 = vld [vmem:[#allocation10 + $0x90] sm:$0xff]
        %v694 = vld [vmem:[#allocation10 + $0x98] sm:$0xff]
        %v695 = vld [vmem:[#allocation10 + $0xa0] sm:$0xff]
        %v696 = vld [vmem:[#allocation10 + $0xa8] sm:$0xff]
        %v697 = vld [vmem:[#allocation10 + $0xb0] sm:$0xff]
        %v698 = vld [vmem:[#allocation10 + $0xb8] sm:$0xff]
        %v699 = vld [vmem:[#allocation10 + $0xc0] sm:$0xff]
        %v700 = vld [vmem:[#allocation10 + $0xc8] sm:$0xff]
        %v701 = vld [vmem:[#allocation10 + $0xd0] sm:$0xff]
        %v702 = vld [vmem:[#allocation10 + $0xd8] sm:$0xff]
        %v703 = vld [vmem:[#allocation10 + $0xe0] sm:$0xff]
        %v704 = vld [vmem:[#allocation10 + $0xe8] sm:$0xff]
        %v705 = vld [vmem:[#allocation10 + $0xf0] sm:$0xff]
        %v706 = vld [vmem:[#allocation10 + $0xf8] sm:$0xff]
        %v707 = vld [vmem:[#allocation2] sm:$0xff]
        %v708 = vld [vmem:[#allocation3] sm:$0xff]
        %v709 = vld [vmem:[#allocation4] sm:$0xff]
        %v710 = vld [vmem:[#allocation4 + $0x8] sm:$0xff]
        %v711 = vld [vmem:[#allocation4 + $0x10] sm:$0xff]
        %v712 = vld [vmem:[#allocation4 + $0x18] sm:$0xff]
        %v713 = vpack.c.bf16 %v707, %v707
        %v746 = vunpack.c.l.b16 %v675
        %v747 = vunpack.c.h.b16 %v675
        %v748 = vunpack.c.l.b16 %v676
        %v749 = vunpack.c.h.b16 %v676
        %v750 = vunpack.c.l.b16 %v677
        %v751 = vunpack.c.h.b16 %v677
        %v752 = vunpack.c.l.b16 %v678
        %v753 = vunpack.c.h.b16 %v678
        %v754 = vunpack.c.l.b16 %v679
        %v755 = vunpack.c.h.b16 %v679
        %v756 = vunpack.c.l.b16 %v680
        %v757 = vunpack.c.h.b16 %v680
        %v758 = vunpack.c.l.b16 %v681
        %v759 = vunpack.c.h.b16 %v681
        %v760 = vunpack.c.l.b16 %v682
        %v761 = vunpack.c.h.b16 %v682
        %v762 = vunpack.c.l.b16 %v683
        %v763 = vunpack.c.h.b16 %v683
        %v764 = vunpack.c.l.b16 %v684
        %v765 = vunpack.c.h.b16 %v684
        %v766 = vunpack.c.l.b16 %v685
        %v767 = vunpack.c.h.b16 %v685
        %v768 = vunpack.c.l.b16 %v686
        %v769 = vunpack.c.h.b16 %v686
        %v770 = vunpack.c.l.b16 %v687
        %v771 = vunpack.c.h.b16 %v687
        %v772 = vunpack.c.l.b16 %v688
        %v773 = vunpack.c.h.b16 %v688
        %v774 = vunpack.c.l.b16 %v689
        %v775 = vunpack.c.h.b16 %v689
        %v776 = vunpack.c.l.b16 %v690
        %v777 = vunpack.c.h.b16 %v690
        %v778 = vunpack.c.l.b16 %v691
        %v779 = vunpack.c.h.b16 %v691
        %v780 = vunpack.c.l.b16 %v692
        %v781 = vunpack.c.h.b16 %v692
        %v782 = vunpack.c.l.b16 %v693
        %v783 = vunpack.c.h.b16 %v693
        %v784 = vunpack.c.l.b16 %v694
        %v785 = vunpack.c.h.b16 %v694
        %v786 = vunpack.c.l.b16 %v695
        %v787 = vunpack.c.h.b16 %v695
        %v788 = vunpack.c.l.b16 %v696
        %v789 = vunpack.c.h.b16 %v696
        %v790 = vunpack.c.l.b16 %v697
        %v791 = vunpack.c.h.b16 %v697
        %v792 = vunpack.c.l.b16 %v698
        %v793 = vunpack.c.h.b16 %v698
        %v794 = vunpack.c.l.b16 %v699
        %v795 = vunpack.c.h.b16 %v699
        %v796 = vunpack.c.l.b16 %v700
        %v797 = vunpack.c.h.b16 %v700
        %v798 = vunpack.c.l.b16 %v701
        %v799 = vunpack.c.h.b16 %v701
        %v800 = vunpack.c.l.b16 %v702
        %v801 = vunpack.c.h.b16 %v702
        %v802 = vunpack.c.l.b16 %v703
        %v803 = vunpack.c.h.b16 %v703
        %v804 = vunpack.c.l.b16 %v704
        %v805 = vunpack.c.h.b16 %v704
        %v806 = vunpack.c.l.b16 %v705
        %v807 = vunpack.c.h.b16 %v705
        %v808 = vunpack.c.l.b16 %v706
        %v809 = vunpack.c.h.b16 %v706
        %v810 = vpack.c.b16 %v750, %v746
        %v811 = vpack.c.b16 %v751, %v747
        %v812 = vpack.c.b16 %v752, %v748
        %v813 = vpack.c.b16 %v753, %v749
        %v814 = vpack.c.b16 %v758, %v754
        %v815 = vpack.c.b16 %v759, %v755
        %v816 = vpack.c.b16 %v760, %v756
        %v817 = vpack.c.b16 %v761, %v757
        %v818 = vpack.c.b16 %v766, %v762
        %v819 = vpack.c.b16 %v767, %v763
        %v820 = vpack.c.b16 %v768, %v764
        %v821 = vpack.c.b16 %v769, %v765
        %v822 = vpack.c.b16 %v774, %v770
        %v823 = vpack.c.b16 %v775, %v771
        %v824 = vpack.c.b16 %v776, %v772
        %v825 = vpack.c.b16 %v777, %v773
        %v826 = vpack.c.b16 %v782, %v778
        %v827 = vpack.c.b16 %v783, %v779
        %v828 = vpack.c.b16 %v784, %v780
        %v829 = vpack.c.b16 %v785, %v781
        %v830 = vpack.c.b16 %v790, %v786
        %v831 = vpack.c.b16 %v791, %v787
        %v832 = vpack.c.b16 %v792, %v788
        %v833 = vpack.c.b16 %v793, %v789
        %v834 = vpack.c.b16 %v798, %v794
        %v835 = vpack.c.b16 %v799, %v795
        %v836 = vpack.c.b16 %v800, %v796
        %v837 = vpack.c.b16 %v801, %v797
        %v838 = vpack.c.b16 %v806, %v802
        %v839 = vpack.c.b16 %v807, %v803
        %v840 = vpack.c.b16 %v808, %v804
        %v841 = vpack.c.b16 %v809, %v805
        %874 = vmatprep.subr.bf16.mxu0 %v839
        %875 = vmatpush1.bf16.msra.mxu0 %v838
        %876 = vmatprep.subr.bf16.mxu0 %v835
        %877 = vmatpush1.bf16.msra.mxu0 %v834
        %878 = vmatprep.subr.bf16.mxu0 %v831
        %879 = vmatpush1.bf16.msra.mxu0 %v830
        %880 = vmatprep.subr.bf16.mxu0 %v827
        %881 = vmatpush1.bf16.msra.mxu0 %v826
        %882 = vmatprep.subr.bf16.mxu0 %v823
        %883 = vmatpush1.bf16.msra.mxu0 %v822
        %884 = vmatprep.subr.bf16.mxu0 %v819
        %885 = vmatpush1.bf16.msra.mxu0 %v818
        %886 = vmatprep.subr.bf16.mxu0 %v815
        %887 = vmatpush1.bf16.msra.mxu0 %v814
        %888 = vmatprep.subr.bf16.mxu0 %v811
        %889 = vmatpush1.bf16.msra.mxu0 %v810
        %890 = vmatprep.subr.bf16.mxu0 0
        %891 = vmatpush2.bf16.msra.mxu0 0
        %892 = vmatprep.subr.bf16.mxu0 0
        %893 = vmatpush2.bf16.msra.mxu0 0
        %894 = vmatprep.subr.bf16.mxu0 0
        %895 = vmatpush2.bf16.msra.mxu0 0
        %896 = vmatprep.subr.bf16.mxu0 0
        %897 = vmatpush2.bf16.msra.mxu0 0
        %898 = vmatprep.subr.bf16.mxu0 0
        %899 = vmatpush2.bf16.msra.mxu0 0
        %900 = vmatprep.subr.bf16.mxu0 0
        %901 = vmatpush2.bf16.msra.mxu0 0
        %902 = vmatprep.subr.bf16.mxu0 0
        %903 = vmatpush2.bf16.msra.mxu0 0
        %904 = vmatprep.subr.bf16.mxu0 0
        %905 = vmatpush2.bf16.msra.mxu0 0
        %906 = vmatprep.mubr.bf16.mxu0 0
        %907 = vmatmul.mubr.bf16.gmra.mxu0 %v713
        %v908 = vpop.f32.mrf.mxu0
        %v909 = vadd.f32 0.0, %v908
        %v910 = vpop.f32.mrf.mxu0
        %v911 = vadd.f32 0.0, %v910
        %v912 = vpop.f32.mrf.mxu0
        %v913 = vpop.f32.mrf.mxu0
        %914 = vdwg.mxu0
        %915 = vmatprep.subr.bf16.mxu0 %v841
        %916 = vmatpush1.bf16.msra.mxu0 %v840
        %917 = vmatprep.subr.bf16.mxu0 %v837
        %918 = vmatpush1.bf16.msra.mxu0 %v836
        %919 = vmatprep.subr.bf16.mxu0 %v833
        %920 = vmatpush1.bf16.msra.mxu0 %v832
        %921 = vmatprep.subr.bf16.mxu0 %v829
        %922 = vmatpush1.bf16.msra.mxu0 %v828
        %923 = vmatprep.subr.bf16.mxu0 %v825
        %924 = vmatpush1.bf16.msra.mxu0 %v824
        %925 = vmatprep.subr.bf16.mxu0 %v821
        %926 = vmatpush1.bf16.msra.mxu0 %v820
        %927 = vmatprep.subr.bf16.mxu0 %v817
        %928 = vmatpush1.bf16.msra.mxu0 %v816
        %929 = vmatprep.subr.bf16.mxu0 %v813
        %930 = vmatpush1.bf16.msra.mxu0 %v812
        %931 = vmatprep.subr.bf16.mxu0 0
        %932 = vmatpush2.bf16.msra.mxu0 0
        %933 = vmatprep.subr.bf16.mxu0 0
        %934 = vmatpush2.bf16.msra.mxu0 0
        %935 = vmatprep.subr.bf16.mxu0 0
        %936 = vmatpush2.bf16.msra.mxu0 0
        %937 = vmatprep.subr.bf16.mxu0 0
        %938 = vmatpush2.bf16.msra.mxu0 0
        %939 = vmatprep.subr.bf16.mxu0 0
        %940 = vmatpush2.bf16.msra.mxu0 0
        %941 = vmatprep.subr.bf16.mxu0 0
        %942 = vmatpush2.bf16.msra.mxu0 0
        %943 = vmatprep.subr.bf16.mxu0 0
        %944 = vmatpush2.bf16.msra.mxu0 0
        %945 = vmatprep.subr.bf16.mxu0 0
        %946 = vmatpush2.bf16.msra.mxu0 0
        %947 = vmatprep.mubr.bf16.mxu0 0
        %948 = vmatmul.mubr.bf16.gmra.mxu0 %v713
        %v949 = vpop.f32.mrf.mxu0
        %v950 = vadd.f32 0.0, %v949
        %v951 = vpop.f32.mrf.mxu0
        %v952 = vadd.f32 0.0, %v951
        %v953 = vpop.f32.mrf.mxu0
        %v954 = vpop.f32.mrf.mxu0
        %955 = vdwg.mxu0
        %v956 = vadd.f32 %v709, %v909
        %v957 = vadd.f32 %v710, %v911
        %v958 = vadd.f32 %v711, %v950
        %v959 = vadd.f32 %v712, %v952
        %v960 = vxor.u32 %v956, 2147483648
        %v961 = vmul.f32 %v960, 1.442695
        %v962 = vpow.pop %v961
        %v963 = vadd.f32 %v962, 1.0
        %v964 = vrcp.pop %v963
        %v965 = vmul.f32 1.0, %v964
        %v966 = vxor.u32 %v957, 2147483648
        %v967 = vmul.f32 %v966, 1.442695
        %v968 = vpow.pop %v967
        %v969 = vadd.f32 %v968, 1.0
        %v970 = vrcp.pop %v969
        %v971 = vmul.f32 1.0, %v970
        %v972 = vtanh.pop %v958
        %v973 = vxor.u32 %v959, 2147483648
        %v974 = vmul.f32 %v973, 1.442695
        %v975 = vpow.pop %v974
        %v976 = vadd.f32 %v975, 1.0
        %v977 = vrcp.pop %v976
        %v978 = vmul.f32 1.0, %v977
        %v979 = vmul.f32 %v971, %v708
        %v980 = vmul.f32 %v965, %v972
        %v981 = vadd.f32 %v979, %v980
        %v982 = vtanh.pop %v981
        %v983 = vmul.f32 %v978, %v982
        %v984 = vld [vmem:[#allocation4 + $0x20] sm:$0xff]
        %v985 = vld [vmem:[#allocation4 + $0x28] sm:$0xff]
        %v986 = vld [vmem:[#allocation4 + $0x30] sm:$0xff]
        %v987 = vld [vmem:[#allocation4 + $0x38] sm:$0xff]
        %v988 = vpack.c.bf16 %v983, %v983
        %989 = vmatprep.subr.bf16.mxu0 %v839
        %990 = vmatpush1.bf16.msra.mxu0 %v838
        %991 = vmatprep.subr.bf16.mxu0 %v835
        %992 = vmatpush1.bf16.msra.mxu0 %v834
        %993 = vmatprep.subr.bf16.mxu0 %v831
        %994 = vmatpush1.bf16.msra.mxu0 %v830
        %995 = vmatprep.subr.bf16.mxu0 %v827
        %996 = vmatpush1.bf16.msra.mxu0 %v826
        %997 = vmatprep.subr.bf16.mxu0 %v823
        %998 = vmatpush1.bf16.msra.mxu0 %v822
        %999 = vmatprep.subr.bf16.mxu0 %v819
        %1000 = vmatpush1.bf16.msra.mxu0 %v818
        %1001 = vmatprep.subr.bf16.mxu0 %v815
        %1002 = vmatpush1.bf16.msra.mxu0 %v814
        %1003 = vmatprep.subr.bf16.mxu0 %v811
        %1004 = vmatpush1.bf16.msra.mxu0 %v810
        %1005 = vmatprep.subr.bf16.mxu0 0
        %1006 = vmatpush2.bf16.msra.mxu0 0
        %1007 = vmatprep.subr.bf16.mxu0 0
        %1008 = vmatpush2.bf16.msra.mxu0 0
        %1009 = vmatprep.subr.bf16.mxu0 0
        %1010 = vmatpush2.bf16.msra.mxu0 0
        %1011 = vmatprep.subr.bf16.mxu0 0
        %1012 = vmatpush2.bf16.msra.mxu0 0
        %1013 = vmatprep.subr.bf16.mxu0 0
        %1014 = vmatpush2.bf16.msra.mxu0 0
        %1015 = vmatprep.subr.bf16.mxu0 0
        %1016 = vmatpush2.bf16.msra.mxu0 0
        %1017 = vmatprep.subr.bf16.mxu0 0
        %1018 = vmatpush2.bf16.msra.mxu0 0
        %1019 = vmatprep.subr.bf16.mxu0 0
        %1020 = vmatpush2.bf16.msra.mxu0 0
        %1021 = vmatprep.mubr.bf16.mxu0 0
        %1022 = vmatmul.mubr.bf16.gmra.mxu0 %v988
        %v1023 = vpop.f32.mrf.mxu0
        %v1024 = vadd.f32 0.0, %v1023
        %v1025 = vpop.f32.mrf.mxu0
        %v1026 = vadd.f32 0.0, %v1025
        %v1027 = vpop.f32.mrf.mxu0
        %v1028 = vpop.f32.mrf.mxu0
        %1029 = vdwg.mxu0
        %1030 = vmatprep.subr.bf16.mxu0 %v841
        %1031 = vmatpush1.bf16.msra.mxu0 %v840
        %1032 = vmatprep.subr.bf16.mxu0 %v837
        %1033 = vmatpush1.bf16.msra.mxu0 %v836
        %1034 = vmatprep.subr.bf16.mxu0 %v833
        %1035 = vmatpush1.bf16.msra.mxu0 %v832
        %1036 = vmatprep.subr.bf16.mxu0 %v829
        %1037 = vmatpush1.bf16.msra.mxu0 %v828
        %1038 = vmatprep.subr.bf16.mxu0 %v825
        %1039 = vmatpush1.bf16.msra.mxu0 %v824
        %1040 = vmatprep.subr.bf16.mxu0 %v821
        %1041 = vmatpush1.bf16.msra.mxu0 %v820
        %1042 = vmatprep.subr.bf16.mxu0 %v817
        %1043 = vmatpush1.bf16.msra.mxu0 %v816
        %1044 = vmatprep.subr.bf16.mxu0 %v813
        %1045 = vmatpush1.bf16.msra.mxu0 %v812
        %1046 = vmatprep.subr.bf16.mxu0 0
        %1047 = vmatpush2.bf16.msra.mxu0 0
        %1048 = vmatprep.subr.bf16.mxu0 0
        %1049 = vmatpush2.bf16.msra.mxu0 0
        %1050 = vmatprep.subr.bf16.mxu0 0
        %1051 = vmatpush2.bf16.msra.mxu0 0
        %1052 = vmatprep.subr.bf16.mxu0 0
        %1053 = vmatpush2.bf16.msra.mxu0 0
        %1054 = vmatprep.subr.bf16.mxu0 0
        %1055 = vmatpush2.bf16.msra.mxu0 0
        %1056 = vmatprep.subr.bf16.mxu0 0
        %1057 = vmatpush2.bf16.msra.mxu0 0
        %1058 = vmatprep.subr.bf16.mxu0 0
        %1059 = vmatpush2.bf16.msra.mxu0 0
        %1060 = vmatprep.subr.bf16.mxu0 0
        %1061 = vmatpush2.bf16.msra.mxu0 0
        %1062 = vmatprep.mubr.bf16.mxu0 0
        %1063 = vmatmul.mubr.bf16.gmra.mxu0 %v988
        %v1064 = vpop.f32.mrf.mxu0
        %v1065 = vadd.f32 0.0, %v1064
        %v1066 = vpop.f32.mrf.mxu0
        %v1067 = vadd.f32 0.0, %v1066
        %v1068 = vpop.f32.mrf.mxu0
        %v1069 = vpop.f32.mrf.mxu0
        %1070 = vdwg.mxu0
        %v1071 = vadd.f32 %v984, %v1024
        %v1072 = vadd.f32 %v985, %v1026
        %v1073 = vadd.f32 %v986, %v1065
        %v1074 = vadd.f32 %v987, %v1067
        %v1075 = vxor.u32 %v1071, 2147483648
        %v1076 = vmul.f32 %v1075, 1.442695
        %v1077 = vpow.pop %v1076
        %v1078 = vadd.f32 %v1077, 1.0
        %v1079 = vrcp.pop %v1078
        %v1080 = vmul.f32 1.0, %v1079
        %v1081 = vxor.u32 %v1072, 2147483648
        %v1082 = vmul.f32 %v1081, 1.442695
        %v1083 = vpow.pop %v1082
        %v1084 = vadd.f32 %v1083, 1.0
        %v1085 = vrcp.pop %v1084
        %v1086 = vmul.f32 1.0, %v1085
        %v1087 = vtanh.pop %v1073
        %v1088 = vxor.u32 %v1074, 2147483648
        %v1089 = vmul.f32 %v1088, 1.442695
        %v1090 = vpow.pop %v1089
        %v1091 = vadd.f32 %v1090, 1.0
        %v1092 = vrcp.pop %v1091
        %v1093 = vmul.f32 1.0, %v1092
        %v1094 = vmul.f32 %v1086, %v981
        %v1095 = vmul.f32 %v1080, %v1087
        %v1096 = vadd.f32 %v1094, %v1095
        %v1097 = vtanh.pop %v1096
        %v1098 = vmul.f32 %v1093, %v1097
        %v1099 = vld [vmem:[#allocation4 + $0x40] sm:$0xff]
        %v1100 = vld [vmem:[#allocation4 + $0x48] sm:$0xff]
        %v1101 = vld [vmem:[#allocation4 + $0x50] sm:$0xff]
        %v1102 = vld [vmem:[#allocation4 + $0x58] sm:$0xff]
        %v1103 = vpack.c.bf16 %v1098, %v1098
        %1104 = vmatprep.subr.bf16.mxu0 %v839
        %1105 = vmatpush1.bf16.msra.mxu0 %v838
        %1106 = vmatprep.subr.bf16.mxu0 %v835
        %1107 = vmatpush1.bf16.msra.mxu0 %v834
        %1108 = vmatprep.subr.bf16.mxu0 %v831
        %1109 = vmatpush1.bf16.msra.mxu0 %v830
        %1110 = vmatprep.subr.bf16.mxu0 %v827
        %1111 = vmatpush1.bf16.msra.mxu0 %v826
        %1112 = vmatprep.subr.bf16.mxu0 %v823
        %1113 = vmatpush1.bf16.msra.mxu0 %v822
        %1114 = vmatprep.subr.bf16.mxu0 %v819
        %1115 = vmatpush1.bf16.msra.mxu0 %v818
        %1116 = vmatprep.subr.bf16.mxu0 %v815
        %1117 = vmatpush1.bf16.msra.mxu0 %v814
        %1118 = vmatprep.subr.bf16.mxu0 %v811
        %1119 = vmatpush1.bf16.msra.mxu0 %v810
        %1120 = vmatprep.subr.bf16.mxu0 0
        %1121 = vmatpush2.bf16.msra.mxu0 0
        %1122 = vmatprep.subr.bf16.mxu0 0
        %1123 = vmatpush2.bf16.msra.mxu0 0
        %1124 = vmatprep.subr.bf16.mxu0 0
        %1125 = vmatpush2.bf16.msra.mxu0 0
        %1126 = vmatprep.subr.bf16.mxu0 0
        %1127 = vmatpush2.bf16.msra.mxu0 0
        %1128 = vmatprep.subr.bf16.mxu0 0
        %1129 = vmatpush2.bf16.msra.mxu0 0
        %1130 = vmatprep.subr.bf16.mxu0 0
        %1131 = vmatpush2.bf16.msra.mxu0 0
        %1132 = vmatprep.subr.bf16.mxu0 0
        %1133 = vmatpush2.bf16.msra.mxu0 0
        %1134 = vmatprep.subr.bf16.mxu0 0
        %1135 = vmatpush2.bf16.msra.mxu0 0
        %1136 = vmatprep.mubr.bf16.mxu0 0
        %1137 = vmatmul.mubr.bf16.gmra.mxu0 %v1103
        %v1138 = vpop.f32.mrf.mxu0
        %v1139 = vadd.f32 0.0, %v1138
        %v1140 = vpop.f32.mrf.mxu0
        %v1141 = vadd.f32 0.0, %v1140
        %v1142 = vpop.f32.mrf.mxu0
        %v1143 = vpop.f32.mrf.mxu0
        %1144 = vdwg.mxu0
        %1145 = vmatprep.subr.bf16.mxu0 %v841
        %1146 = vmatpush1.bf16.msra.mxu0 %v840
        %1147 = vmatprep.subr.bf16.mxu0 %v837
        %1148 = vmatpush1.bf16.msra.mxu0 %v836
        %1149 = vmatprep.subr.bf16.mxu0 %v833
        %1150 = vmatpush1.bf16.msra.mxu0 %v832
        %1151 = vmatprep.subr.bf16.mxu0 %v829
        %1152 = vmatpush1.bf16.msra.mxu0 %v828
        %1153 = vmatprep.subr.bf16.mxu0 %v825
        %1154 = vmatpush1.bf16.msra.mxu0 %v824
        %1155 = vmatprep.subr.bf16.mxu0 %v821
        %1156 = vmatpush1.bf16.msra.mxu0 %v820
        %1157 = vmatprep.subr.bf16.mxu0 %v817
        %1158 = vmatpush1.bf16.msra.mxu0 %v816
        %1159 = vmatprep.subr.bf16.mxu0 %v813
        %1160 = vmatpush1.bf16.msra.mxu0 %v812
        %1161 = vmatprep.subr.bf16.mxu0 0
        %1162 = vmatpush2.bf16.msra.mxu0 0
        %1163 = vmatprep.subr.bf16.mxu0 0
        %1164 = vmatpush2.bf16.msra.mxu0 0
        %1165 = vmatprep.subr.bf16.mxu0 0
        %1166 = vmatpush2.bf16.msra.mxu0 0
        %1167 = vmatprep.subr.bf16.mxu0 0
        %1168 = vmatpush2.bf16.msra.mxu0 0
        %1169 = vmatprep.subr.bf16.mxu0 0
        %1170 = vmatpush2.bf16.msra.mxu0 0
        %1171 = vmatprep.subr.bf16.mxu0 0
        %1172 = vmatpush2.bf16.msra.mxu0 0
        %1173 = vmatprep.subr.bf16.mxu0 0
        %1174 = vmatpush2.bf16.msra.mxu0 0
        %1175 = vmatprep.subr.bf16.mxu0 0
        %1176 = vmatpush2.bf16.msra.mxu0 0
        %1177 = vmatprep.mubr.bf16.mxu0 0
        %1178 = vmatmul.mubr.bf16.gmra.mxu0 %v1103
        %v1179 = vpop.f32.mrf.mxu0
        %v1180 = vadd.f32 0.0, %v1179
        %v1181 = vpop.f32.mrf.mxu0
        %v1182 = vadd.f32 0.0, %v1181
        %v1183 = vpop.f32.mrf.mxu0
        %v1184 = vpop.f32.mrf.mxu0
        %1185 = vdwg.mxu0
        %v1186 = vadd.f32 %v1099, %v1139
        %v1187 = vadd.f32 %v1100, %v1141
        %v1188 = vadd.f32 %v1101, %v1180
        %v1189 = vadd.f32 %v1102, %v1182
        %v1190 = vxor.u32 %v1186, 2147483648
        %v1191 = vmul.f32 %v1190, 1.442695
        %v1192 = vpow.pop %v1191
        %v1193 = vadd.f32 %v1192, 1.0
        %v1194 = vrcp.pop %v1193
        %v1195 = vmul.f32 1.0, %v1194
        %v1196 = vxor.u32 %v1187, 2147483648
        %v1197 = vmul.f32 %v1196, 1.442695
        %v1198 = vpow.pop %v1197
        %v1199 = vadd.f32 %v1198, 1.0
        %v1200 = vrcp.pop %v1199
        %v1201 = vmul.f32 1.0, %v1200
        %v1202 = vtanh.pop %v1188
        %v1203 = vxor.u32 %v1189, 2147483648
        %v1204 = vmul.f32 %v1203, 1.442695
        %v1205 = vpow.pop %v1204
        %v1206 = vadd.f32 %v1205, 1.0
        %v1207 = vrcp.pop %v1206
        %v1208 = vmul.f32 1.0, %v1207
        %v1209 = vmul.f32 %v1201, %v1096
        %v1210 = vmul.f32 %v1195, %v1202
        %v1211 = vadd.f32 %v1209, %v1210
        %v1212 = vtanh.pop %v1211
        %v1213 = vmul.f32 %v1208, %v1212
        %v1214 = vld [vmem:[#allocation4 + $0x60] sm:$0xff]
        %v1215 = vld [vmem:[#allocation4 + $0x68] sm:$0xff]
        %v1216 = vld [vmem:[#allocation4 + $0x70] sm:$0xff]
        %v1217 = vld [vmem:[#allocation4 + $0x78] sm:$0xff]
        %v1218 = vpack.c.bf16 %v1213, %v1213
        %1219 = vmatprep.subr.bf16.mxu0 %v839
        %1220 = vmatpush1.bf16.msra.mxu0 %v838
        %1221 = vmatprep.subr.bf16.mxu0 %v835
        %1222 = vmatpush1.bf16.msra.mxu0 %v834
        %1223 = vmatprep.subr.bf16.mxu0 %v831
        %1224 = vmatpush1.bf16.msra.mxu0 %v830
        %1225 = vmatprep.subr.bf16.mxu0 %v827
        %1226 = vmatpush1.bf16.msra.mxu0 %v826
        %1227 = vmatprep.subr.bf16.mxu0 %v823
        %1228 = vmatpush1.bf16.msra.mxu0 %v822
        %1229 = vmatprep.subr.bf16.mxu0 %v819
        %1230 = vmatpush1.bf16.msra.mxu0 %v818
        %1231 = vmatprep.subr.bf16.mxu0 %v815
        %1232 = vmatpush1.bf16.msra.mxu0 %v814
        %1233 = vmatprep.subr.bf16.mxu0 %v811
        %1234 = vmatpush1.bf16.msra.mxu0 %v810
        %1235 = vmatprep.subr.bf16.mxu0 0
        %1236 = vmatpush2.bf16.msra.mxu0 0
        %1237 = vmatprep.subr.bf16.mxu0 0
        %1238 = vmatpush2.bf16.msra.mxu0 0
        %1239 = vmatprep.subr.bf16.mxu0 0
        %1240 = vmatpush2.bf16.msra.mxu0 0
        %1241 = vmatprep.subr.bf16.mxu0 0
        %1242 = vmatpush2.bf16.msra.mxu0 0
        %1243 = vmatprep.subr.bf16.mxu0 0
        %1244 = vmatpush2.bf16.msra.mxu0 0
        %1245 = vmatprep.subr.bf16.mxu0 0
        %1246 = vmatpush2.bf16.msra.mxu0 0
        %1247 = vmatprep.subr.bf16.mxu0 0
        %1248 = vmatpush2.bf16.msra.mxu0 0
        %1249 = vmatprep.subr.bf16.mxu0 0
        %1250 = vmatpush2.bf16.msra.mxu0 0
        %1251 = vmatprep.mubr.bf16.mxu0 0
        %1252 = vmatmul.mubr.bf16.gmra.mxu0 %v1218
        %v1253 = vpop.f32.mrf.mxu0
        %v1254 = vadd.f32 0.0, %v1253
        %v1255 = vpop.f32.mrf.mxu0
        %v1256 = vadd.f32 0.0, %v1255
        %v1257 = vpop.f32.mrf.mxu0
        %v1258 = vpop.f32.mrf.mxu0
        %1259 = vdwg.mxu0
        %1260 = vmatprep.subr.bf16.mxu0 %v841
        %1261 = vmatpush1.bf16.msra.mxu0 %v840
        %1262 = vmatprep.subr.bf16.mxu0 %v837
        %1263 = vmatpush1.bf16.msra.mxu0 %v836
        %1264 = vmatprep.subr.bf16.mxu0 %v833
        %1265 = vmatpush1.bf16.msra.mxu0 %v832
        %1266 = vmatprep.subr.bf16.mxu0 %v829
        %1267 = vmatpush1.bf16.msra.mxu0 %v828
        %1268 = vmatprep.subr.bf16.mxu0 %v825
        %1269 = vmatpush1.bf16.msra.mxu0 %v824
        %1270 = vmatprep.subr.bf16.mxu0 %v821
        %1271 = vmatpush1.bf16.msra.mxu0 %v820
        %1272 = vmatprep.subr.bf16.mxu0 %v817
        %1273 = vmatpush1.bf16.msra.mxu0 %v816
        %1274 = vmatprep.subr.bf16.mxu0 %v813
        %1275 = vmatpush1.bf16.msra.mxu0 %v812
        %1276 = vmatprep.subr.bf16.mxu0 0
        %1277 = vmatpush2.bf16.msra.mxu0 0
        %1278 = vmatprep.subr.bf16.mxu0 0
        %1279 = vmatpush2.bf16.msra.mxu0 0
        %1280 = vmatprep.subr.bf16.mxu0 0
        %1281 = vmatpush2.bf16.msra.mxu0 0
        %1282 = vmatprep.subr.bf16.mxu0 0
        %1283 = vmatpush2.bf16.msra.mxu0 0
        %1284 = vmatprep.subr.bf16.mxu0 0
        %1285 = vmatpush2.bf16.msra.mxu0 0
        %1286 = vmatprep.subr.bf16.mxu0 0
        %1287 = vmatpush2.bf16.msra.mxu0 0
        %1288 = vmatprep.subr.bf16.mxu0 0
        %1289 = vmatpush2.bf16.msra.mxu0 0
        %1290 = vmatprep.subr.bf16.mxu0 0
        %1291 = vmatpush2.bf16.msra.mxu0 0
        %1292 = vmatprep.mubr.bf16.mxu0 0
        %1293 = vmatmul.mubr.bf16.gmra.mxu0 %v1218
        %v1294 = vpop.f32.mrf.mxu0
        %v1295 = vadd.f32 0.0, %v1294
        %v1296 = vpop.f32.mrf.mxu0
        %v1297 = vadd.f32 0.0, %v1296
        %v1298 = vpop.f32.mrf.mxu0
        %v1299 = vpop.f32.mrf.mxu0
        %1300 = vdwg.mxu0
        %v1301 = vadd.f32 %v1214, %v1254
        %v1302 = vadd.f32 %v1215, %v1256
        %v1303 = vadd.f32 %v1216, %v1295
        %v1304 = vadd.f32 %v1217, %v1297
        %v1305 = vxor.u32 %v1301, 2147483648
        %v1306 = vmul.f32 %v1305, 1.442695
        %v1307 = vpow.pop %v1306
        %v1308 = vadd.f32 %v1307, 1.0
        %v1309 = vrcp.pop %v1308
        %v1310 = vmul.f32 1.0, %v1309
        %v1311 = vxor.u32 %v1302, 2147483648
        %v1312 = vmul.f32 %v1311, 1.442695
        %v1313 = vpow.pop %v1312
        %v1314 = vadd.f32 %v1313, 1.0
        %v1315 = vrcp.pop %v1314
        %v1316 = vmul.f32 1.0, %v1315
        %v1317 = vtanh.pop %v1303
        %v1318 = vxor.u32 %v1304, 2147483648
        %v1319 = vmul.f32 %v1318, 1.442695
        %v1320 = vpow.pop %v1319
        %v1321 = vadd.f32 %v1320, 1.0
        %v1322 = vrcp.pop %v1321
        %v1323 = vmul.f32 1.0, %v1322
        %v1324 = vmul.f32 %v1316, %v1211
        %v1325 = vmul.f32 %v1310, %v1317
        %v1326 = vadd.f32 %v1324, %v1325
        %v1327 = vtanh.pop %v1326
        %v1328 = vmul.f32 %v1323, %v1327
        %1329 = vst [vmem:[#allocation2] sm:$0xff] %v1328
        %1330 = vst [vmem:[#allocation3] sm:$0xff] %v1326
        %v1331 = vpack.c.bf16 %v1098, %v983
        %v1332 = vpack.c.bf16 %v1328, %v1213
        %v1333 = vld [vmem:[#allocation11] sm:$0xf]
        %v1334 = vld [vmem:[#allocation11 + $0x4] sm:$0xf]
        %v1335 = vld [vmem:[#allocation11 + $0x8] sm:$0xf]
        %v1336 = vld [vmem:[#allocation11 + $0xc] sm:$0xf]
        %v1337 = vld [vmem:[#allocation11 + $0x10] sm:$0xf]
        %v1338 = vld [vmem:[#allocation11 + $0x14] sm:$0xf]
        %v1339 = vld [vmem:[#allocation11 + $0x18] sm:$0xf]
        %v1340 = vld [vmem:[#allocation11 + $0x1c] sm:$0xf]
        %v1341 = vld [vmem:[#allocation11 + $0x20] sm:$0xf]
        %v1342 = vld [vmem:[#allocation11 + $0x24] sm:$0xf]
        %v1343 = vld [vmem:[#allocation11 + $0x28] sm:$0xf]
        %v1344 = vld [vmem:[#allocation11 + $0x2c] sm:$0xf]
        %v1345 = vld [vmem:[#allocation11 + $0x30] sm:$0xf]
        %v1346 = vld [vmem:[#allocation11 + $0x34] sm:$0xf]
        %v1347 = vld [vmem:[#allocation11 + $0x38] sm:$0xf]
        %v1348 = vld [vmem:[#allocation11 + $0x3c] sm:$0xf]
        %v1349 = vld [vmem:[%s5] sm:$0x1]
        %v1351 = vlaneseq
        %v1352 = vshrl.u32 %v1351, 7
        %v1353 = vsub.s32 0, %v1352
        %v1354 = vrot.slane %v1349, %v1353
        %v1372 = vunpack.c.l.b16 %v1333
        %v1373 = vunpack.c.l.b16 %v1334
        %v1374 = vunpack.c.l.b16 %v1335
        %v1375 = vunpack.c.l.b16 %v1336
        %v1376 = vunpack.c.l.b16 %v1337
        %v1377 = vunpack.c.l.b16 %v1338
        %v1378 = vunpack.c.l.b16 %v1339
        %v1379 = vunpack.c.l.b16 %v1340
        %v1380 = vunpack.c.l.b16 %v1341
        %v1381 = vunpack.c.l.b16 %v1342
        %v1382 = vunpack.c.l.b16 %v1343
        %v1383 = vunpack.c.l.b16 %v1344
        %v1384 = vunpack.c.l.b16 %v1345
        %v1385 = vunpack.c.l.b16 %v1346
        %v1386 = vunpack.c.l.b16 %v1347
        %v1387 = vunpack.c.l.b16 %v1348
        %v1388 = vpack.c.b16 %v1373, %v1372
        %v1389 = vpack.c.b16 %v1375, %v1374
        %v1390 = vpack.c.b16 %v1377, %v1376
        %v1391 = vpack.c.b16 %v1379, %v1378
        %v1392 = vpack.c.b16 %v1381, %v1380
        %v1393 = vpack.c.b16 %v1383, %v1382
        %v1394 = vpack.c.b16 %v1385, %v1384
        %v1395 = vpack.c.b16 %v1387, %v1386
        %1404 = vmatprep.subr.bf16.mxu0 0
        %1405 = vmatpush1.bf16.msra.mxu0 %v1395
        %1406 = vmatprep.subr.bf16.mxu0 0
        %1407 = vmatpush1.bf16.msra.mxu0 %v1394
        %1408 = vmatprep.subr.bf16.mxu0 0
        %1409 = vmatpush1.bf16.msra.mxu0 %v1393
        %1410 = vmatprep.subr.bf16.mxu0 0
        %1411 = vmatpush1.bf16.msra.mxu0 %v1392
        %1412 = vmatprep.subr.bf16.mxu0 0
        %1413 = vmatpush1.bf16.msra.mxu0 %v1391
        %1414 = vmatprep.subr.bf16.mxu0 0
        %1415 = vmatpush1.bf16.msra.mxu0 %v1390
        %1416 = vmatprep.subr.bf16.mxu0 0
        %1417 = vmatpush1.bf16.msra.mxu0 %v1389
        %1418 = vmatprep.subr.bf16.mxu0 0
        %1419 = vmatpush1.bf16.msra.mxu0 %v1388
        %1420 = vmatprep.subr.bf16.mxu0 0
        %1421 = vmatpush2.bf16.msra.mxu0 0
        %1422 = vmatprep.subr.bf16.mxu0 0
        %1423 = vmatpush2.bf16.msra.mxu0 0
        %1424 = vmatprep.subr.bf16.mxu0 0
        %1425 = vmatpush2.bf16.msra.mxu0 0
        %1426 = vmatprep.subr.bf16.mxu0 0
        %1427 = vmatpush2.bf16.msra.mxu0 0
        %1428 = vmatprep.subr.bf16.mxu0 0
        %1429 = vmatpush2.bf16.msra.mxu0 0
        %1430 = vmatprep.subr.bf16.mxu0 0
        %1431 = vmatpush2.bf16.msra.mxu0 0
        %1432 = vmatprep.subr.bf16.mxu0 0
        %1433 = vmatpush2.bf16.msra.mxu0 0
        %1434 = vmatprep.subr.bf16.mxu0 0
        %1435 = vmatpush2.bf16.msra.mxu0 0
        %1436 = vmatprep.mubr.bf16.mxu0 0
        %1437 = vmatmul.mubr.bf16.gmra.mxu0 %v1331
        %v1438 = vpop.f32.mrf.mxu0
        %v1439 = vadd.f32 %v1354, %v1438
        %v1440 = vpop.f32.mrf.mxu0
        %v1441 = vpop.f32.mrf.mxu0
        %v1442 = vadd.f32 %v1354, %v1441
        %v1443 = vpop.f32.mrf.mxu0
        %1444 = vmatprep.mubr.bf16.mxu0 0
        %1445 = vmatmul.mubr.bf16.gmra.mxu0 %v1332
        %v1446 = vpop.f32.mrf.mxu0
        %v1447 = vadd.f32 %v1354, %v1446
        %v1448 = vpop.f32.mrf.mxu0
        %v1449 = vpop.f32.mrf.mxu0
        %v1450 = vadd.f32 %v1354, %v1449
        %v1451 = vpop.f32.mrf.mxu0
        %1452 = vdwg.mxu0
        %1453 = vmax.xlane.f32.xlu0 %v1439
        %v1454 = vpop.xlane.xlu0 %1453
        %1455 = vmax.xlane.f32.xlu0 %v1442
        %v1456 = vpop.xlane.xlu0 %1455
        %1457 = vmax.xlane.f32.xlu0 %v1447
        %v1458 = vpop.xlane.xlu0 %1457
        %1459 = vmax.xlane.f32.xlu0 %v1450
        %v1460 = vpop.xlane.xlu0 %1459
        %v1461 = vsub.f32 %v1439, %v1454
        %v1462 = vsub.f32 %v1442, %v1456
        %v1463 = vsub.f32 %v1447, %v1458
        %v1464 = vsub.f32 %v1450, %v1460
        %v1465 = vmul.f32 %v1461, 1.442695
        %v1466 = vpow.pop %v1465
        %v1467 = vmul.f32 %v1462, 1.442695
        %v1468 = vpow.pop %v1467
        %v1469 = vmul.f32 %v1463, 1.442695
        %v1470 = vpow.pop %v1469
        %v1471 = vmul.f32 %v1464, 1.442695
        %v1472 = vpow.pop %v1471
        %1473 = vadd.xlane.f32.xlu0 %v1466
        %v1474 = vpop.xlane.xlu0 %1473
        %1475 = vadd.xlane.f32.xlu0 %v1468
        %v1476 = vpop.xlane.xlu0 %1475
        %1477 = vadd.xlane.f32.xlu0 %v1470
        %v1478 = vpop.xlane.xlu0 %1477
        %1479 = vadd.xlane.f32.xlu0 %v1472
        %v1480 = vpop.xlane.xlu0 %1479
        %v1481 = vrcp.pop %v1474
        %v1482 = vmul.f32 %v1466, %v1481
        %v1483 = vrcp.pop %v1476
        %v1484 = vmul.f32 %v1468, %v1483
        %v1485 = vrcp.pop %v1478
        %v1486 = vmul.f32 %v1470, %v1485
        %v1487 = vrcp.pop %v1480
        %v1488 = vmul.f32 %v1472, %v1487
        %1489 = vst [vmem:[%s313] sm:$0xff] %v1482
        %1490 = vst [vmem:[%s313 + $0x8] sm:$0xff] %v1484
        %1491 = vst [vmem:[%s313 + $0x10] sm:$0xff] %v1486
        %1492 = vst [vmem:[%s313 + $0x18] sm:$0xff] %v1488
        %s1493 = sand.u32 %s164, 1
        %s1494 = scalar_lea.sflag [#allocation7], %s1493
        %s1495 = sand.u32 %s164, 1
        %s1496 = smul.addr %s1495, 32
        %s1497 = scalar_lea.vmem [#allocation13], %s1496
        // Predicated region
        $region65: #{tpu_custom_call.1} parent=43 // pred_check
          %p1498 = pneg %p174
        $region66: #{tpu_custom_call.1} parent=43 // pred_check_branch
          %1500 = sbr.rel (%p1498) target = $region68
        $region67: #{tpu_custom_call.1} parent=43 // pred_region
          %s1501 = smul.u32 4, %s25
          %s1503 = ssub.s32 512, 512
          %1504 = vsyncadd %s1494, %s1503
          %s1505 = smul.addr %s1501, 128
          %s1506 = scalar_lea.hbm %s6, %s1505
          %s1507 = sshll.u32 %s1497, 4
          %s1508 = int_to_ptr.vmem [resolvable:$true] %s1507
          %1513 = dma.vmem_to_hbm [thread:$0]  %s1508, 512, %s1506, %s1494, 128, 128, 8
        $region68: #{tpu_custom_call.1} parent=43 // pred_fallthru
          _
      $region44: #{tpu_custom_call.1} parent=5 // pred_fallthru
        _
      %p1514 = scmp.le.s32.totalorder 2, %s20
      // Predicated region
      $region69: #{tpu_custom_call.1} parent=5 // pred_check
        %p1515 = pneg %p1514
      $region70: #{tpu_custom_call.1} parent=5 // pred_check_branch
        %1517 = sbr.rel (%p1515) target = $region72
      $region71: #{tpu_custom_call.1} parent=5 // pred_region
        %s1518 = ssub.s32 %s20, 2
        // Predicated region
        $region73: #{tpu_custom_call.1} parent=71 // pred_check
          %p1519 = pneg %p180
        $region74: #{tpu_custom_call.1} parent=71 // pred_check_branch
          %1521 = sbr.rel (%p1519) target = $region76
        $region75: #{tpu_custom_call.1} parent=71 // pred_region
          %s1522 = sand.u32 %s165, 1
          %s1523 = scalar_lea.sflag [#allocation7], %s1522
          %s1524 = sand.u32 %s165, 1
          %s1525 = smul.addr %s1524, 32
          %s1526 = scalar_lea.vmem [#allocation13], %s1525
          %1527 = dma.done %s1523, 512
        $region76: #{tpu_custom_call.1} parent=71 // pred_fallthru
          _
      $region72: #{tpu_custom_call.1} parent=5 // pred_fallthru
        _
    $region6: #{tpu_custom_call.1} parent=1 // loop_footer
      %s24 = sadd.s32 1, %s20
    $region7: #{tpu_custom_call.1} parent=1 // loop_footer_branch
      %19 = sbr.rel target = $region3
    $region8: #{tpu_custom_call.1} parent=1 // loop_exit
      _
    %1528 = vsyncpa [#allocation6], 1
    %s1529 = scalar_lea.sflag [#allocation6], 1
    %1530 = vsyncpa %s1529, 1
    %1531 = vsyncpa [#allocation9], 1
    %1532 = vsyncpa [#allocation12], 1
    %1533 = vsyncpa [#allocation7], 1
    %s1534 = scalar_lea.sflag [#allocation7], 1
    %1535 = vsyncpa %s1534, 1

</llo_original>
